<compile_context>
chip_gen: v6e
topology: v6e:2x2x1
jax: 0.10.0
libtpu: 0.0.40
codegen_flags: <defaults>
</compile_context>

<pallas_src>
import math

import numpy as np
import jax
import jax.numpy as jnp
from jax.experimental import pallas as pl
from jax.experimental.pallas import tpu as pltpu

N_QUBITS = 8
DIM = 1 << N_QUBITS            # 256
N_LAYERS = 3
PARAMS_PER_GATE = 15           # ensemble_type == 'general'
N_CLS_PARAMS = N_LAYERS * (N_QUBITS - 1) * PARAMS_PER_GATE  # 315
N_ENC_PARAMS = 32
ADAM_ITERS = 100
ADAM_LR = 0.1
ADAM_UNROLL = 4                # 100 % 4 == 0
N_CONST_ROWS = 16              # 8 bit masks + Z sign + 2 grad coeffs + padding
HEAD_LANES = 64                # w1(16) | b1(16) | w2(16) | b2(1) | pad(15)


# ----------------------------------------------------------------------------
# Fused kernel: FRQI targets + 100-step Adam + RY product state + fused
# circuit unitary (single real-input complex matmul) + <Z_0> + classical head.
# ----------------------------------------------------------------------------
def paper_qnn_kernel(flat_ref, p0_ref, consts_ref, gate_ref, head_ref,
                     c1_ref, c2_ref, out_ref):
    TB = flat_ref.shape[0]
    flat = flat_ref[...]                                   # (TB, 256)

    # --- FRQI preprocessing: min/max over the whole image -> angles in [0,pi/2)
    minv = jnp.min(flat, axis=1, keepdims=True)
    maxv = jnp.max(flat, axis=1, keepdims=True)
    target = (flat[:, :N_ENC_PARAMS] - minv) / (maxv - minv + 1e-8) \
        * (math.pi / 2.0)                                  # (TB, 32); lanes>=8 unused

    # loop-invariant gradient coefficients (host-built):
    #   A  = 2/8 on lanes<8  + 0.02/32 on lanes<32       (d/dp of angle + L2 loss)
    #   Bt = 2/8 * target on lanes<8, 0 elsewhere
    coefA = consts_ref[9:10, :N_ENC_PARAMS]                # (1, 32)
    coefT = consts_ref[10:11, :N_ENC_PARAMS]               # (1, 32)
    A = jnp.broadcast_to(coefA, (TB, N_ENC_PARAMS))        # hoisted (no per-iter bcast)
    Bt = coefT * target                                    # (TB, 32)

    # --- 100 Adam steps on the 32 encoding params
    p = p0_ref[...]                                        # (TB, 32)
    m = jnp.zeros_like(p)
    v = jnp.zeros_like(p)

    def adam_block(i, carry):
        p, m, v = carry
        base = i * ADAM_UNROLL
        for j in range(ADAM_UNROLL):                       # unrolled body
            t = base + j
            g = A * p - Bt
            m = 0.9 * m + 0.1 * g
            v = 0.999 * v + 0.001 * (g * g)
            # bias corrections precomputed on host, read from SMEM:
            #   c1[t] = lr / (1 - 0.9^(t+1)),  c2[t] = 1 / sqrt(1 - 0.999^(t+1))
            denom = jnp.sqrt(v) * c2_ref[t] + 1e-8
            p = p - (c1_ref[t] * m) * pl.reciprocal(denom, approx=True)
        return p, m, v

    p, _, _ = jax.lax.fori_loop(0, ADAM_ITERS // ADAM_UNROLL, adam_block,
                                (p, m, v))

    # --- |psi0> = prod_q RY(p_q)|0>  (real product state, wire 0 = MSB)
    half = p[:, :N_QUBITS] * 0.5                           # (TB, 8) half-angles
    cs = jnp.cos(half)
    sn = jnp.sin(half)
    c0 = cs[:, 0:1]
    s0 = sn[:, 0:1]
    amp = c0 + consts_ref[0:1, :] * (s0 - c0)              # (TB, 256)
    for q in range(1, N_QUBITS):
        c = cs[:, q:q + 1]
        s = sn[:, q:q + 1]
        amp = amp * (c + consts_ref[q:q + 1, :] * (s - c))

    # --- fused circuit unitary: psi_row @ [Re U^T | Im U^T]  (one MXU matmul)
    psi = jnp.dot(amp, gate_ref[...], preferred_element_type=jnp.float32)  # (TB, 512)
    nr = psi[:, :DIM]
    ni = psi[:, DIM:]
    prob = nr * nr + ni * ni

    # <Z_0>: PauliZ on wire 0 (MSB of the basis index), sign row precomputed
    z = jnp.sum(prob * consts_ref[8:9, :], axis=1, keepdims=True)          # (TB, 1)

    # classical head: Linear(1,16) -> ReLU -> [Dropout = id] -> Linear(16,1)
    head = head_ref[...]                                   # (1, 64)
    w1 = head[:, 0:16]
    b1 = head[:, 16:32]
    w2 = head[:, 32:48]
    b2 = head[:, 48:49]
    h = jnp.maximum(z * w1 + b1, 0.0)                      # (TB, 16)
    out_ref[...] = jnp.sum(h * w2, axis=1, keepdims=True) + b2


# ----------------------------------------------------------------------------
# Host-side constant builders
# ----------------------------------------------------------------------------
def _rx(t):
    c, s = np.cos(t / 2), np.sin(t / 2)
    return np.array([[c, -1j * s], [-1j * s, c]], dtype=np.complex128)


def _ry(t):
    c, s = np.cos(t / 2), np.sin(t / 2)
    return np.array([[c, -s], [s, c]], dtype=np.complex128)


def _rz(t):
    return np.array([[np.exp(-1j * t / 2), 0], [0, np.exp(1j * t / 2)]],
                    dtype=np.complex128)


_I2 = np.eye(2, dtype=np.complex128)
# control = first wire (MSB of the 2-qubit block index)
_CNOT_01 = np.array([[1, 0, 0, 0], [0, 1, 0, 0], [0, 0, 0, 1], [0, 0, 1, 0]],
                    dtype=np.complex128)
# control = second wire (LSB), target = first wire (MSB)
_CNOT_10 = np.array([[1, 0, 0, 0], [0, 0, 0, 1], [0, 0, 1, 0], [0, 1, 0, 0]],
                    dtype=np.complex128)


def _block_unitary(g):
    """SU(4)-style 15-parameter block on wires (i, i+1); wire i is the MSB."""
    on0 = lambda u: np.kron(u, _I2)
    on1 = lambda u: np.kron(_I2, u)
    ops = [
        on0(_rx(g[0])), on0(_ry(g[1])), on0(_rz(g[2])),
        on1(_rx(g[3])), on1(_ry(g[4])), on1(_rz(g[5])),
        _CNOT_01,
        on0(_rx(g[6])), on0(_ry(g[7])), on0(_rz(g[8])),
        on1(_rx(g[9])), on1(_ry(g[10])), on1(_rz(g[11])),
        _CNOT_10,
        on0(_ry(g[12])), on0(_rz(g[13])),
        on1(_ry(g[14])),
    ]
    u = np.eye(4, dtype=np.complex128)
    for op in ops:                 # time order: left-multiply
        u = op @ u
    return u


def build_fused_gate(classifier_params):
    """Fuse all 21 lifted block unitaries (float64) -> packed (256, 512) f32."""
    cp = np.asarray(classifier_params, dtype=np.float64)
    U = np.eye(DIM, dtype=np.complex128)
    idx = 0
    for _layer in range(N_LAYERS):
        for i in range(N_QUBITS - 1):
            g = cp[idx:idx + PARAMS_PER_GATE]
            u4 = _block_unitary(g)
            u256 = np.kron(np.eye(1 << i, dtype=np.complex128),
                           np.kron(u4, np.eye(1 << (N_QUBITS - 2 - i),
                                              dtype=np.complex128)))
            U = u256 @ U           # time order: left-multiply
            idx += PARAMS_PER_GATE
    # idx == 315 == len(classifier_params) -> no trailing RY gate is emitted.
    Ut = U.T                       # row-vector convention: psi_row @ U^T
    packed = np.concatenate([Ut.real, Ut.imag], axis=1).astype(np.float32)
    return jnp.asarray(packed)     # (256, 512)


def build_consts():
    """(16, 256) f32: rows 0-7 per-qubit bit masks, row 8 Z sign, rows 9-10
    the Adam gradient coefficient vectors (live in lanes < 32)."""
    consts = np.zeros((N_CONST_ROWS, DIM), dtype=np.float32)
    j = np.arange(DIM)
    for q in range(N_QUBITS):
        consts[q] = ((j >> (N_QUBITS - 1 - q)) & 1).astype(np.float32)
    consts[8] = np.where(j < DIM // 2, 1.0, -1.0).astype(np.float32)
    coefA = np.zeros(DIM, dtype=np.float32)
    coefA[:N_ENC_PARAMS] = 2.0 * 0.01 / N_ENC_PARAMS       # d/dp of 0.01*mean(p^2)
    coefA[:N_QUBITS] += 2.0 / N_QUBITS                     # d/dp of mean((p-t)^2)
    consts[9] = coefA
    coefT = np.zeros(DIM, dtype=np.float32)
    coefT[:N_QUBITS] = 2.0 / N_QUBITS
    consts[10] = coefT
    return jnp.asarray(consts)


def build_adam_tables():
    """Host-precomputed per-step Adam bias corrections (read from SMEM)."""
    t = np.arange(1, ADAM_ITERS + 1, dtype=np.float64)
    c1 = ADAM_LR / (1.0 - 0.9 ** t)
    c2 = 1.0 / np.sqrt(1.0 - 0.999 ** t)
    return (jnp.asarray(c1, dtype=jnp.float32),
            jnp.asarray(c2, dtype=jnp.float32))


def pack_head(w1, b1, w2, b2):
    """Pack Linear(1,16) and Linear(16,1) params into one (1, 64) operand."""
    return jnp.concatenate(
        [w1.reshape(1, 16).astype(jnp.float32),
         b1.reshape(1, 16).astype(jnp.float32),
         w2.reshape(1, 16).astype(jnp.float32),
         b2.reshape(1, 1).astype(jnp.float32),
         jnp.zeros((1, HEAD_LANES - 49), jnp.float32)], axis=1)


# ----------------------------------------------------------------------------
# Wrapper
# ----------------------------------------------------------------------------
def _pick_tb(B):
    """Cap tile at 32; for B >= 16 guarantee >= 2 grid steps (v7x: 2 TCs)."""
    if B < 16:
        return B
    for t in (32, 16, 8):
        if B % t == 0 and B // t >= 2:
            return t
    return B


def paper_qnn_forward(x, enc_init, gate_packed, consts, head_packed,
                      adam_c1, adam_c2):
    B = x.shape[0]
    flat = x.reshape(B, -1).astype(jnp.float32)                 # (B, 256)
    assert flat.shape[1] == DIM, "demo uses 16x16 images (256 pixels)"
    p0 = enc_init.astype(jnp.float32)                           # (B, 32)

    tb = _pick_tb(B)
    assert B % tb == 0
    grid = (B // tb,)

    return pl.pallas_call(
        paper_qnn_kernel,
        out_shape=jax.ShapeDtypeStruct((B, 1), jnp.float32),
        grid=grid,
        in_specs=[
            pl.BlockSpec((tb, DIM), lambda b: (b, 0)),              # flat images
            pl.BlockSpec((tb, N_ENC_PARAMS), lambda b: (b, 0)),     # enc param init
            pl.BlockSpec((N_CONST_ROWS, DIM), lambda b: (0, 0)),    # masks / sign / coeffs
            pl.BlockSpec((DIM, 2 * DIM), lambda b: (0, 0)),         # fused gate
            pl.BlockSpec((1, HEAD_LANES), lambda b: (0, 0)),        # packed head
            pl.BlockSpec(memory_space=pltpu.MemorySpace.SMEM),      # Adam c1 table
            pl.BlockSpec(memory_space=pltpu.MemorySpace.SMEM),      # Adam c2 table
        ],
        out_specs=pl.BlockSpec((tb, 1), lambda b: (b, 0)),
        compiler_params=pltpu.CompilerParams(
            dimension_semantics=("parallel",)),                     # v7x: 2nd TC at B>=16
    )(flat, p0, consts, gate_packed, head_packed, adam_c1, adam_c2)


if __name__ == "__main__":
    key = jax.random.PRNGKey(0)
    k_x, k_cls, k_enc, k_w1, k_b1, k_w2, k_b2 = jax.random.split(key, 7)

    B, H, W = 2, 16, 16          # 16x16 images (no 28->32 padding branch)
    x = jax.random.normal(k_x, (B, H, W), dtype=jnp.float32)

    # classifier params: torch.randn(315) * 0.1 analogue
    classifier_params = jax.random.normal(k_cls, (N_CLS_PARAMS,),
                                          dtype=jnp.float32) * 0.1
    gate_packed = build_fused_gate(classifier_params)
    consts = build_consts()
    adam_c1, adam_c2 = build_adam_tables()

    # per-image encoding-param init: torch.randn(32) * 0.1 analogue
    enc_init = jax.random.normal(k_enc, (B, N_ENC_PARAMS),
                                 dtype=jnp.float32) * 0.1

    # classical head parameters: Linear(1,16) and Linear(16,1)
    w1 = jax.random.uniform(k_w1, (1, 16), jnp.float32, -1.0, 1.0)
    b1 = jax.random.uniform(k_b1, (1, 16), jnp.float32, -1.0, 1.0)
    w2 = jax.random.uniform(k_w2, (1, 16), jnp.float32, -0.25, 0.25)
    b2 = jax.random.uniform(k_b2, (1, 1), jnp.float32, -0.25, 0.25)
    head_packed = pack_head(w1, b1, w2, b2)

    out = paper_qnn_forward(x, enc_init, gate_packed, consts, head_packed,
                            adam_c1, adam_c2)
    out = jax.block_until_ready(out)
    assert out.shape == (B, 1)
    print("KERNEL_OK")
</pallas_src>

<mosaic_0001>
module attributes {stable_mosaic.version = 11 : i64} {
  func.func @paper_qnn_kernel(%arg0: i32, %arg1: memref<2x256xf32, #tpu.memory_space<vmem>>, %arg2: memref<2x32xf32, #tpu.memory_space<vmem>>, %arg3: memref<16x256xf32, #tpu.memory_space<vmem>>, %arg4: memref<256x512xf32, #tpu.memory_space<vmem>>, %arg5: memref<1x64xf32, #tpu.memory_space<vmem>>, %arg6: memref<100xf32, #tpu.memory_space<smem>>, %arg7: memref<100xf32, #tpu.memory_space<smem>>, %arg8: memref<2x1xf32, #tpu.memory_space<vmem>>) attributes {dimension_semantics = [#tpu.dimension_semantics<parallel>], iteration_bounds = array<i64: 1>, scalar_prefetch = 0 : i64, scratch_operands = 0 : i64, tpu.core_type = #tpu.core_type<tc>, window_params = [{transform_indices = @transform_0, window_bounds = array<i64: 2, 256>}, {transform_indices = @transform_1, window_bounds = array<i64: 2, 32>}, {pipeline_mode = #tpu.pipeline_mode<synchronous>, transform_indices = @transform_2, window_bounds = array<i64: 16, 256>}, {pipeline_mode = #tpu.pipeline_mode<synchronous>, transform_indices = @transform_3, window_bounds = array<i64: 256, 512>}, {pipeline_mode = #tpu.pipeline_mode<synchronous>, transform_indices = @transform_4, window_bounds = array<i64: 1, 64>}, {transform_indices = @transform_5, window_bounds = array<i64: 100>}, {transform_indices = @transform_6, window_bounds = array<i64: 100>}, {transform_indices = @transform_7, window_bounds = array<i64: 2, 1>}]} {
    %c0 = arith.constant 0 : index
    %c0_0 = arith.constant 0 : index
    %0 = vector.load %arg1[%c0, %c0_0] : memref<2x256xf32, #tpu.memory_space<vmem>>, vector<2x256xf32>
    %cst = arith.constant dense<0x7F800000> : vector<2xf32>
    %1 = vector.multi_reduction <minimumf>, %0, %cst [1] : vector<2x256xf32> to vector<2xf32>
    %2 = vector.shape_cast %1 : vector<2xf32> to vector<2x1xf32>
    %cst_1 = arith.constant dense<0xFF800000> : vector<2xf32>
    %3 = vector.multi_reduction <maximumf>, %0, %cst_1 [1] : vector<2x256xf32> to vector<2xf32>
    %4 = vector.shape_cast %3 : vector<2xf32> to vector<2x1xf32>
    %5 = vector.extract_strided_slice %0 {offsets = [0, 0], sizes = [2, 32], strides = [1, 1]} : vector<2x256xf32> to vector<2x32xf32>
    %6 = vector.broadcast %2 : vector<2x1xf32> to vector<2x32xf32>
    %7 = arith.subf %5, %6 : vector<2x32xf32>
    %8 = arith.subf %4, %2 : vector<2x1xf32>
    %cst_2 = arith.constant 9.99999993E-9 : f32
    %9 = vector.broadcast %cst_2 : f32 to vector<2x1xf32>
    %10 = arith.addf %8, %9 : vector<2x1xf32>
    %11 = vector.broadcast %10 : vector<2x1xf32> to vector<2x32xf32>
    %12 = arith.divf %7, %11 : vector<2x32xf32>
    %cst_3 = arith.constant 1.57079637 : f32
    %13 = vector.broadcast %cst_3 : f32 to vector<2x32xf32>
    %14 = arith.mulf %12, %13 : vector<2x32xf32>
    %c9 = arith.constant 9 : index
    %c0_4 = arith.constant 0 : index
    %15 = vector.load %arg3[%c9, %c0_4] : memref<16x256xf32, #tpu.memory_space<vmem>>, vector<1x32xf32>
    %c10 = arith.constant 10 : index
    %c0_5 = arith.constant 0 : index
    %16 = vector.load %arg3[%c10, %c0_5] : memref<16x256xf32, #tpu.memory_space<vmem>>, vector<1x32xf32>
    %17 = vector.shape_cast %15 : vector<1x32xf32> to vector<1x32xf32>
    %18 = vector.broadcast %17 : vector<1x32xf32> to vector<2x32xf32>
    %19 = vector.broadcast %16 : vector<1x32xf32> to vector<2x32xf32>
    %20 = arith.mulf %19, %14 : vector<2x32xf32>
    %c0_6 = arith.constant 0 : index
    %c0_7 = arith.constant 0 : index
    %21 = vector.load %arg2[%c0_6, %c0_7] : memref<2x32xf32, #tpu.memory_space<vmem>>, vector<2x32xf32>
    %cst_8 = arith.constant 0.000000e+00 : f32
    %22 = vector.broadcast %cst_8 : f32 to vector<2x32xf32>
    %cst_9 = arith.constant 0.000000e+00 : f32
    %23 = vector.broadcast %cst_9 : f32 to vector<2x32xf32>
    %c0_i32 = arith.constant 0 : i32
    %c25_i32 = arith.constant 25 : i32
    %24 = arith.addi %c0_i32, %c25_i32 : i32
    %c1_i32 = arith.constant 1 : i32
    %25:3 = scf.for %arg9 = %c0_i32 to %24 step %c1_i32 iter_args(%arg10 = %21, %arg11 = %22, %arg12 = %23) -> (vector<2x32xf32>, vector<2x32xf32>, vector<2x32xf32>)  : i32 {
      %c4_i32 = arith.constant 4 : i32
      %141 = arith.muli %arg9, %c4_i32 : i32
      %c0_i32_32 = arith.constant 0 : i32
      %142 = arith.addi %141, %c0_i32_32 : i32
      %143 = arith.mulf %18, %arg10 : vector<2x32xf32>
      %144 = arith.subf %143, %20 : vector<2x32xf32>
      %cst_33 = arith.constant 0.899999976 : f32
      %145 = vector.broadcast %cst_33 : f32 to vector<2x32xf32>
      %146 = arith.mulf %145, %arg11 : vector<2x32xf32>
      %cst_34 = arith.constant 1.000000e-01 : f32
      %147 = vector.broadcast %cst_34 : f32 to vector<2x32xf32>
      %148 = arith.mulf %147, %144 : vector<2x32xf32>
      %149 = arith.addf %146, %148 : vector<2x32xf32>
      %cst_35 = arith.constant 9.990000e-01 : f32
      %150 = vector.broadcast %cst_35 : f32 to vector<2x32xf32>
      %151 = arith.mulf %150, %arg12 : vector<2x32xf32>
      %152 = arith.mulf %144, %144 : vector<2x32xf32>
      %cst_36 = arith.constant 1.000000e-03 : f32
      %153 = vector.broadcast %cst_36 : f32 to vector<2x32xf32>
      %154 = arith.mulf %153, %152 : vector<2x32xf32>
      %155 = arith.addf %151, %154 : vector<2x32xf32>
      %156 = math.sqrt %155 : vector<2x32xf32>
      %157 = arith.index_cast %142 : i32 to index
      %158 = memref.load %arg7[%157] : memref<100xf32, #tpu.memory_space<smem>>
      %159 = vector.broadcast %158 : f32 to vector<2x32xf32>
      %160 = arith.mulf %156, %159 : vector<2x32xf32>
      %cst_37 = arith.constant 9.99999993E-9 : f32
      %161 = vector.broadcast %cst_37 : f32 to vector<2x32xf32>
      %162 = arith.addf %160, %161 : vector<2x32xf32>
      %163 = arith.index_cast %142 : i32 to index
      %164 = memref.load %arg6[%163] : memref<100xf32, #tpu.memory_space<smem>>
      %165 = vector.broadcast %164 : f32 to vector<2x32xf32>
      %166 = arith.mulf %165, %149 : vector<2x32xf32>
      %167 = tpu.reciprocal %162 {approx = true} : vector<2x32xf32> -> vector<2x32xf32>
      %168 = arith.mulf %166, %167 : vector<2x32xf32>
      %169 = arith.subf %arg10, %168 : vector<2x32xf32>
      %c1_i32_38 = arith.constant 1 : i32
      %170 = arith.addi %141, %c1_i32_38 : i32
      %171 = arith.mulf %18, %169 : vector<2x32xf32>
      %172 = arith.subf %171, %20 : vector<2x32xf32>
      %cst_39 = arith.constant 0.899999976 : f32
      %173 = vector.broadcast %cst_39 : f32 to vector<2x32xf32>
      %174 = arith.mulf %173, %149 : vector<2x32xf32>
      %cst_40 = arith.constant 1.000000e-01 : f32
      %175 = vector.broadcast %cst_40 : f32 to vector<2x32xf32>
      %176 = arith.mulf %175, %172 : vector<2x32xf32>
      %177 = arith.addf %174, %176 : vector<2x32xf32>
      %cst_41 = arith.constant 9.990000e-01 : f32
      %178 = vector.broadcast %cst_41 : f32 to vector<2x32xf32>
      %179 = arith.mulf %178, %155 : vector<2x32xf32>
      %180 = arith.mulf %172, %172 : vector<2x32xf32>
      %cst_42 = arith.constant 1.000000e-03 : f32
      %181 = vector.broadcast %cst_42 : f32 to vector<2x32xf32>
      %182 = arith.mulf %181, %180 : vector<2x32xf32>
      %183 = arith.addf %179, %182 : vector<2x32xf32>
      %184 = math.sqrt %183 : vector<2x32xf32>
      %185 = arith.index_cast %170 : i32 to index
      %186 = memref.load %arg7[%185] : memref<100xf32, #tpu.memory_space<smem>>
      %187 = vector.broadcast %186 : f32 to vector<2x32xf32>
      %188 = arith.mulf %184, %187 : vector<2x32xf32>
      %cst_43 = arith.constant 9.99999993E-9 : f32
      %189 = vector.broadcast %cst_43 : f32 to vector<2x32xf32>
      %190 = arith.addf %188, %189 : vector<2x32xf32>
      %191 = arith.index_cast %170 : i32 to index
      %192 = memref.load %arg6[%191] : memref<100xf32, #tpu.memory_space<smem>>
      %193 = vector.broadcast %192 : f32 to vector<2x32xf32>
      %194 = arith.mulf %193, %177 : vector<2x32xf32>
      %195 = tpu.reciprocal %190 {approx = true} : vector<2x32xf32> -> vector<2x32xf32>
      %196 = arith.mulf %194, %195 : vector<2x32xf32>
      %197 = arith.subf %169, %196 : vector<2x32xf32>
      %c2_i32 = arith.constant 2 : i32
      %198 = arith.addi %141, %c2_i32 : i32
      %199 = arith.mulf %18, %197 : vector<2x32xf32>
      %200 = arith.subf %199, %20 : vector<2x32xf32>
      %cst_44 = arith.constant 0.899999976 : f32
      %201 = vector.broadcast %cst_44 : f32 to vector<2x32xf32>
      %202 = arith.mulf %201, %177 : vector<2x32xf32>
      %cst_45 = arith.constant 1.000000e-01 : f32
      %203 = vector.broadcast %cst_45 : f32 to vector<2x32xf32>
      %204 = arith.mulf %203, %200 : vector<2x32xf32>
      %205 = arith.addf %202, %204 : vector<2x32xf32>
      %cst_46 = arith.constant 9.990000e-01 : f32
      %206 = vector.broadcast %cst_46 : f32 to vector<2x32xf32>
      %207 = arith.mulf %206, %183 : vector<2x32xf32>
      %208 = arith.mulf %200, %200 : vector<2x32xf32>
      %cst_47 = arith.constant 1.000000e-03 : f32
      %209 = vector.broadcast %cst_47 : f32 to vector<2x32xf32>
      %210 = arith.mulf %209, %208 : vector<2x32xf32>
      %211 = arith.addf %207, %210 : vector<2x32xf32>
      %212 = math.sqrt %211 : vector<2x32xf32>
      %213 = arith.index_cast %198 : i32 to index
      %214 = memref.load %arg7[%213] : memref<100xf32, #tpu.memory_space<smem>>
      %215 = vector.broadcast %214 : f32 to vector<2x32xf32>
      %216 = arith.mulf %212, %215 : vector<2x32xf32>
      %cst_48 = arith.constant 9.99999993E-9 : f32
      %217 = vector.broadcast %cst_48 : f32 to vector<2x32xf32>
      %218 = arith.addf %216, %217 : vector<2x32xf32>
      %219 = arith.index_cast %198 : i32 to index
      %220 = memref.load %arg6[%219] : memref<100xf32, #tpu.memory_space<smem>>
      %221 = vector.broadcast %220 : f32 to vector<2x32xf32>
      %222 = arith.mulf %221, %205 : vector<2x32xf32>
      %223 = tpu.reciprocal %218 {approx = true} : vector<2x32xf32> -> vector<2x32xf32>
      %224 = arith.mulf %222, %223 : vector<2x32xf32>
      %225 = arith.subf %197, %224 : vector<2x32xf32>
      %c3_i32 = arith.constant 3 : i32
      %226 = arith.addi %141, %c3_i32 : i32
      %227 = arith.mulf %18, %225 : vector<2x32xf32>
      %228 = arith.subf %227, %20 : vector<2x32xf32>
      %cst_49 = arith.constant 0.899999976 : f32
      %229 = vector.broadcast %cst_49 : f32 to vector<2x32xf32>
      %230 = arith.mulf %229, %205 : vector<2x32xf32>
      %cst_50 = arith.constant 1.000000e-01 : f32
      %231 = vector.broadcast %cst_50 : f32 to vector<2x32xf32>
      %232 = arith.mulf %231, %228 : vector<2x32xf32>
      %233 = arith.addf %230, %232 : vector<2x32xf32>
      %cst_51 = arith.constant 9.990000e-01 : f32
      %234 = vector.broadcast %cst_51 : f32 to vector<2x32xf32>
      %235 = arith.mulf %234, %211 : vector<2x32xf32>
      %236 = arith.mulf %228, %228 : vector<2x32xf32>
      %cst_52 = arith.constant 1.000000e-03 : f32
      %237 = vector.broadcast %cst_52 : f32 to vector<2x32xf32>
      %238 = arith.mulf %237, %236 : vector<2x32xf32>
      %239 = arith.addf %235, %238 : vector<2x32xf32>
      %240 = math.sqrt %239 : vector<2x32xf32>
      %241 = arith.index_cast %226 : i32 to index
      %242 = memref.load %arg7[%241] : memref<100xf32, #tpu.memory_space<smem>>
      %243 = vector.broadcast %242 : f32 to vector<2x32xf32>
      %244 = arith.mulf %240, %243 : vector<2x32xf32>
      %cst_53 = arith.constant 9.99999993E-9 : f32
      %245 = vector.broadcast %cst_53 : f32 to vector<2x32xf32>
      %246 = arith.addf %244, %245 : vector<2x32xf32>
      %247 = arith.index_cast %226 : i32 to index
      %248 = memref.load %arg6[%247] : memref<100xf32, #tpu.memory_space<smem>>
      %249 = vector.broadcast %248 : f32 to vector<2x32xf32>
      %250 = arith.mulf %249, %233 : vector<2x32xf32>
      %251 = tpu.reciprocal %246 {approx = true} : vector<2x32xf32> -> vector<2x32xf32>
      %252 = arith.mulf %250, %251 : vector<2x32xf32>
      %253 = arith.subf %225, %252 : vector<2x32xf32>
      scf.yield %253, %233, %239 : vector<2x32xf32>, vector<2x32xf32>, vector<2x32xf32>
    }
    %c25_i32_10 = arith.constant 25 : i32
    %26 = vector.extract_strided_slice %25#0 {offsets = [0, 0], sizes = [2, 8], strides = [1, 1]} : vector<2x32xf32> to vector<2x8xf32>
    %cst_11 = arith.constant 5.000000e-01 : f32
    %27 = vector.broadcast %cst_11 : f32 to vector<2x8xf32>
    %28 = arith.mulf %26, %27 : vector<2x8xf32>
    %29 = math.cos %28 : vector<2x8xf32>
    %30 = math.sin %28 : vector<2x8xf32>
    %31 = vector.extract_strided_slice %29 {offsets = [0, 0], sizes = [2, 1], strides = [1, 1]} : vector<2x8xf32> to vector<2x1xf32>
    %32 = vector.extract_strided_slice %30 {offsets = [0, 0], sizes = [2, 1], strides = [1, 1]} : vector<2x8xf32> to vector<2x1xf32>
    %c0_12 = arith.constant 0 : index
    %c0_13 = arith.constant 0 : index
    %33 = vector.load %arg3[%c0_12, %c0_13] : memref<16x256xf32, #tpu.memory_space<vmem>>, vector<1x256xf32>
    %34 = arith.subf %32, %31 : vector<2x1xf32>
    %35 = vector.broadcast %33 : vector<1x256xf32> to vector<2x256xf32>
    %36 = vector.broadcast %34 : vector<2x1xf32> to vector<2x256xf32>
    %37 = arith.mulf %35, %36 : vector<2x256xf32>
    %38 = vector.broadcast %31 : vector<2x1xf32> to vector<2x256xf32>
    %39 = arith.addf %38, %37 : vector<2x256xf32>
    %40 = vector.extract_strided_slice %29 {offsets = [0, 1], sizes = [2, 1], strides = [1, 1]} : vector<2x8xf32> to vector<2x1xf32>
    %41 = vector.extract_strided_slice %30 {offsets = [0, 1], sizes = [2, 1], strides = [1, 1]} : vector<2x8xf32> to vector<2x1xf32>
    %c1 = arith.constant 1 : index
    %c0_14 = arith.constant 0 : index
    %42 = vector.load %arg3[%c1, %c0_14] : memref<16x256xf32, #tpu.memory_space<vmem>>, vector<1x256xf32>
    %43 = arith.subf %41, %40 : vector<2x1xf32>
    %44 = vector.broadcast %42 : vector<1x256xf32> to vector<2x256xf32>
    %45 = vector.broadcast %43 : vector<2x1xf32> to vector<2x256xf32>
    %46 = arith.mulf %44, %45 : vector<2x256xf32>
    %47 = vector.broadcast %40 : vector<2x1xf32> to vector<2x256xf32>
    %48 = arith.addf %47, %46 : vector<2x256xf32>
    %49 = arith.mulf %39, %48 : vector<2x256xf32>
    %50 = vector.extract_strided_slice %29 {offsets = [0, 2], sizes = [2, 1], strides = [1, 1]} : vector<2x8xf32> to vector<2x1xf32>
    %51 = vector.extract_strided_slice %30 {offsets = [0, 2], sizes = [2, 1], strides = [1, 1]} : vector<2x8xf32> to vector<2x1xf32>
    %c2 = arith.constant 2 : index
    %c0_15 = arith.constant 0 : index
    %52 = vector.load %arg3[%c2, %c0_15] : memref<16x256xf32, #tpu.memory_space<vmem>>, vector<1x256xf32>
    %53 = arith.subf %51, %50 : vector<2x1xf32>
    %54 = vector.broadcast %52 : vector<1x256xf32> to vector<2x256xf32>
    %55 = vector.broadcast %53 : vector<2x1xf32> to vector<2x256xf32>
    %56 = arith.mulf %54, %55 : vector<2x256xf32>
    %57 = vector.broadcast %50 : vector<2x1xf32> to vector<2x256xf32>
    %58 = arith.addf %57, %56 : vector<2x256xf32>
    %59 = arith.mulf %49, %58 : vector<2x256xf32>
    %60 = vector.extract_strided_slice %29 {offsets = [0, 3], sizes = [2, 1], strides = [1, 1]} : vector<2x8xf32> to vector<2x1xf32>
    %61 = vector.extract_strided_slice %30 {offsets = [0, 3], sizes = [2, 1], strides = [1, 1]} : vector<2x8xf32> to vector<2x1xf32>
    %c3 = arith.constant 3 : index
    %c0_16 = arith.constant 0 : index
    %62 = vector.load %arg3[%c3, %c0_16] : memref<16x256xf32, #tpu.memory_space<vmem>>, vector<1x256xf32>
    %63 = arith.subf %61, %60 : vector<2x1xf32>
    %64 = vector.broadcast %62 : vector<1x256xf32> to vector<2x256xf32>
    %65 = vector.broadcast %63 : vector<2x1xf32> to vector<2x256xf32>
    %66 = arith.mulf %64, %65 : vector<2x256xf32>
    %67 = vector.broadcast %60 : vector<2x1xf32> to vector<2x256xf32>
    %68 = arith.addf %67, %66 : vector<2x256xf32>
    %69 = arith.mulf %59, %68 : vector<2x256xf32>
    %70 = vector.extract_strided_slice %29 {offsets = [0, 4], sizes = [2, 1], strides = [1, 1]} : vector<2x8xf32> to vector<2x1xf32>
    %71 = vector.extract_strided_slice %30 {offsets = [0, 4], sizes = [2, 1], strides = [1, 1]} : vector<2x8xf32> to vector<2x1xf32>
    %c4 = arith.constant 4 : index
    %c0_17 = arith.constant 0 : index
    %72 = vector.load %arg3[%c4, %c0_17] : memref<16x256xf32, #tpu.memory_space<vmem>>, vector<1x256xf32>
    %73 = arith.subf %71, %70 : vector<2x1xf32>
    %74 = vector.broadcast %72 : vector<1x256xf32> to vector<2x256xf32>
    %75 = vector.broadcast %73 : vector<2x1xf32> to vector<2x256xf32>
    %76 = arith.mulf %74, %75 : vector<2x256xf32>
    %77 = vector.broadcast %70 : vector<2x1xf32> to vector<2x256xf32>
    %78 = arith.addf %77, %76 : vector<2x256xf32>
    %79 = arith.mulf %69, %78 : vector<2x256xf32>
    %80 = vector.extract_strided_slice %29 {offsets = [0, 5], sizes = [2, 1], strides = [1, 1]} : vector<2x8xf32> to vector<2x1xf32>
    %81 = vector.extract_strided_slice %30 {offsets = [0, 5], sizes = [2, 1], strides = [1, 1]} : vector<2x8xf32> to vector<2x1xf32>
    %c5 = arith.constant 5 : index
    %c0_18 = arith.constant 0 : index
    %82 = vector.load %arg3[%c5, %c0_18] : memref<16x256xf32, #tpu.memory_space<vmem>>, vector<1x256xf32>
    %83 = arith.subf %81, %80 : vector<2x1xf32>
    %84 = vector.broadcast %82 : vector<1x256xf32> to vector<2x256xf32>
    %85 = vector.broadcast %83 : vector<2x1xf32> to vector<2x256xf32>
    %86 = arith.mulf %84, %85 : vector<2x256xf32>
    %87 = vector.broadcast %80 : vector<2x1xf32> to vector<2x256xf32>
    %88 = arith.addf %87, %86 : vector<2x256xf32>
    %89 = arith.mulf %79, %88 : vector<2x256xf32>
    %90 = vector.extract_strided_slice %29 {offsets = [0, 6], sizes = [2, 1], strides = [1, 1]} : vector<2x8xf32> to vector<2x1xf32>
    %91 = vector.extract_strided_slice %30 {offsets = [0, 6], sizes = [2, 1], strides = [1, 1]} : vector<2x8xf32> to vector<2x1xf32>
    %c6 = arith.constant 6 : index
    %c0_19 = arith.constant 0 : index
    %92 = vector.load %arg3[%c6, %c0_19] : memref<16x256xf32, #tpu.memory_space<vmem>>, vector<1x256xf32>
    %93 = arith.subf %91, %90 : vector<2x1xf32>
    %94 = vector.broadcast %92 : vector<1x256xf32> to vector<2x256xf32>
    %95 = vector.broadcast %93 : vector<2x1xf32> to vector<2x256xf32>
    %96 = arith.mulf %94, %95 : vector<2x256xf32>
    %97 = vector.broadcast %90 : vector<2x1xf32> to vector<2x256xf32>
    %98 = arith.addf %97, %96 : vector<2x256xf32>
    %99 = arith.mulf %89, %98 : vector<2x256xf32>
    %100 = vector.extract_strided_slice %29 {offsets = [0, 7], sizes = [2, 1], strides = [1, 1]} : vector<2x8xf32> to vector<2x1xf32>
    %101 = vector.extract_strided_slice %30 {offsets = [0, 7], sizes = [2, 1], strides = [1, 1]} : vector<2x8xf32> to vector<2x1xf32>
    %c7 = arith.constant 7 : index
    %c0_20 = arith.constant 0 : index
    %102 = vector.load %arg3[%c7, %c0_20] : memref<16x256xf32, #tpu.memory_space<vmem>>, vector<1x256xf32>
    %103 = arith.subf %101, %100 : vector<2x1xf32>
    %104 = vector.broadcast %102 : vector<1x256xf32> to vector<2x256xf32>
    %105 = vector.broadcast %103 : vector<2x1xf32> to vector<2x256xf32>
    %106 = arith.mulf %104, %105 : vector<2x256xf32>
    %107 = vector.broadcast %100 : vector<2x1xf32> to vector<2x256xf32>
    %108 = arith.addf %107, %106 : vector<2x256xf32>
    %109 = arith.mulf %99, %108 : vector<2x256xf32>
    %c0_21 = arith.constant 0 : index
    %c0_22 = arith.constant 0 : index
    %110 = vector.load %arg4[%c0_21, %c0_22] : memref<256x512xf32, #tpu.memory_space<vmem>>, vector<256x512xf32>
    %cst_23 = arith.constant dense<0.000000e+00> : vector<2x512xf32>
    %111 = tpu.matmul %109, %110, %cst_23 {dimension_numbers = #tpu.dot_dimension_numbers<[1], [0], [0], [1], [0, 0, 1, 1], [], []>} : vector<2x256xf32>, vector<256x512xf32>, vector<2x512xf32> -> vector<2x512xf32>
    %112 = vector.extract_strided_slice %111 {offsets = [0, 0], sizes = [2, 256], strides = [1, 1]} : vector<2x512xf32> to vector<2x256xf32>
    %113 = vector.extract_strided_slice %111 {offsets = [0, 256], sizes = [2, 256], strides = [1, 1]} : vector<2x512xf32> to vector<2x256xf32>
    %114 = arith.mulf %112, %112 : vector<2x256xf32>
    %115 = arith.mulf %113, %113 : vector<2x256xf32>
    %116 = arith.addf %114, %115 : vector<2x256xf32>
    %c8 = arith.constant 8 : index
    %c0_24 = arith.constant 0 : index
    %117 = vector.load %arg3[%c8, %c0_24] : memref<16x256xf32, #tpu.memory_space<vmem>>, vector<1x256xf32>
    %118 = vector.broadcast %117 : vector<1x256xf32> to vector<2x256xf32>
    %119 = arith.mulf %116, %118 : vector<2x256xf32>
    %cst_25 = arith.constant dense<0.000000e+00> : vector<2xf32>
    %120 = vector.multi_reduction <add>, %119, %cst_25 [1] : vector<2x256xf32> to vector<2xf32>
    %121 = vector.shape_cast %120 : vector<2xf32> to vector<2x1xf32>
    %c0_26 = arith.constant 0 : index
    %c0_27 = arith.constant 0 : index
    %122 = vector.load %arg5[%c0_26, %c0_27] : memref<1x64xf32, #tpu.memory_space<vmem>>, vector<1x64xf32>
    %123 = vector.extract_strided_slice %122 {offsets = [0, 0], sizes = [1, 16], strides = [1, 1]} : vector<1x64xf32> to vector<1x16xf32>
    %124 = vector.extract_strided_slice %122 {offsets = [0, 16], sizes = [1, 16], strides = [1, 1]} : vector<1x64xf32> to vector<1x16xf32>
    %125 = vector.extract_strided_slice %122 {offsets = [0, 32], sizes = [1, 16], strides = [1, 1]} : vector<1x64xf32> to vector<1x16xf32>
    %126 = vector.extract_strided_slice %122 {offsets = [0, 48], sizes = [1, 1], strides = [1, 1]} : vector<1x64xf32> to vector<1x1xf32>
    %127 = vector.broadcast %121 : vector<2x1xf32> to vector<2x16xf32>
    %128 = vector.broadcast %123 : vector<1x16xf32> to vector<2x16xf32>
    %129 = arith.mulf %127, %128 : vector<2x16xf32>
    %130 = vector.broadcast %124 : vector<1x16xf32> to vector<2x16xf32>
    %131 = arith.addf %129, %130 : vector<2x16xf32>
    %cst_28 = arith.constant 0.000000e+00 : f32
    %132 = vector.broadcast %cst_28 : f32 to vector<2x16xf32>
    %133 = arith.maximumf %131, %132 : vector<2x16xf32>
    %134 = vector.broadcast %125 : vector<1x16xf32> to vector<2x16xf32>
    %135 = arith.mulf %133, %134 : vector<2x16xf32>
    %cst_29 = arith.constant dense<0.000000e+00> : vector<2xf32>
    %136 = vector.multi_reduction <add>, %135, %cst_29 [1] : vector<2x16xf32> to vector<2xf32>
    %137 = vector.shape_cast %136 : vector<2xf32> to vector<2x1xf32>
    %138 = vector.broadcast %126 : vector<1x1xf32> to vector<2x1xf32>
    %139 = arith.addf %137, %138 : vector<2x1xf32>
    %c0_30 = arith.constant 0 : index
    %c0_31 = arith.constant 0 : index
    %140 = vector.load %arg8[%c0_30, %c0_31] : memref<2x1xf32, #tpu.memory_space<vmem>>, vector<2x1xf32>
    tpu.vector_store %arg8[%c0_30, %c0_31], %139 {strides = array<i32>} : memref<2x1xf32, #tpu.memory_space<vmem>>, vector<2x1xf32>,
    return
  }
  func.func @transform_0(%arg0: i32) -> (i32, i32) {
    %c0_i32 = arith.constant 0 : i32
    %c0_i32_0 = arith.constant 0 : i32
    return %arg0, %c0_i32 : i32, i32
  }
  func.func @transform_1(%arg0: i32) -> (i32, i32) {
    %c0_i32 = arith.constant 0 : i32
    %c0_i32_0 = arith.constant 0 : i32
    return %arg0, %c0_i32 : i32, i32
  }
  func.func @transform_2(%arg0: i32) -> (i32, i32) {
    %c0_i32 = arith.constant 0 : i32
    %c0_i32_0 = arith.constant 0 : i32
    %c0_i32_1 = arith.constant 0 : i32
    return %c0_i32, %c0_i32_0 : i32, i32
  }
  func.func @transform_3(%arg0: i32) -> (i32, i32) {
    %c0_i32 = arith.constant 0 : i32
    %c0_i32_0 = arith.constant 0 : i32
    %c0_i32_1 = arith.constant 0 : i32
    return %c0_i32, %c0_i32_0 : i32, i32
  }
  func.func @transform_4(%arg0: i32) -> (i32, i32) {
    %c0_i32 = arith.constant 0 : i32
    %c0_i32_0 = arith.constant 0 : i32
    %c0_i32_1 = arith.constant 0 : i32
    return %c0_i32, %c0_i32_0 : i32, i32
  }
  func.func @transform_5(%arg0: i32) -> i32 {
    %c0_i32 = arith.constant 0 : i32
    %c0_i32_0 = arith.constant 0 : i32
    return %c0_i32 : i32
  }
  func.func @transform_6(%arg0: i32) -> i32 {
    %c0_i32 = arith.constant 0 : i32
    %c0_i32_0 = arith.constant 0 : i32
    return %c0_i32 : i32
  }
  func.func @transform_7(%arg0: i32) -> (i32, i32) {
    %c0_i32 = arith.constant 0 : i32
    %c0_i32_0 = arith.constant 0 : i32
    return %arg0, %c0_i32 : i32, i32
  }
}

</mosaic_0001>

<llo_original>
// kernel: tpu_custom_call.1
$region0: #{tpu_custom_call.1}
  #allocation0 [shape = 'u32[]', space=smem, size = 0x4, offset = 0x4, fixed_abs, tag = 'smem constant byte address 0x4 - core index']
  #allocation1 [shape = 'u32[144,128]{1,0:T(1,128)}', space=vmem, size = 0x12000, scoped, tag = 'internal scratch']
  %s0 = inlined_call_operand.hbm [shape: f32[2,256], index: 0, kind: input, shape index: {}]
  %s1 = inlined_call_operand.hbm [shape: f32[2,32], index: 1, kind: input, shape index: {}]
  %s2 = inlined_call_operand.hbm [shape: f32[16,256], index: 2, kind: input, shape index: {}]
  %s3 = inlined_call_operand.hbm [shape: f32[256,512], index: 3, kind: input, shape index: {}]
  %s4 = inlined_call_operand.vmem [shape: f32[1,64], index: 4, kind: input, shape index: {}]
  %s5 = inlined_call_operand.vmem [shape: f32[100], index: 5, kind: input, shape index: {}]
  %s6 = inlined_call_operand.vmem [shape: f32[100], index: 6, kind: input, shape index: {}]
  %s7 = inlined_call_operand.vmem [shape: f32[2,1], index: 7, kind: output, shape index: {}]
  %s8 = sld [smem:[#allocation0]]
  $region69: #{tpu_custom_call.1} parent=0
    _
  %s10 = ssub.s32 1, %s8
  %s11 = scalar_select 0, %s10, %s8
  $region1: #{tpu_custom_call.1} parent=0
    #allocation2 [shape = 'u8[2048]{0}', space=vmem, size = 0x800, scoped, tag = 'input window, operand 0, single buffered']
    #allocation3 [shape = 's32[1]{0}', space=sflag, size = 0x4, scoped, tag = 'scoped memory for tpu_custom_call.1']
    #allocation4 [shape = 's32[1]{0}', space=sflag, size = 0x4, scoped, tag = 'scoped memory for tpu_custom_call.1']
    #allocation5 [shape = 'u8[1024]{0}', space=vmem, size = 0x400, scoped, tag = 'input window, operand 1, single buffered']
    #allocation6 [shape = 's32[1]{0}', space=sflag, size = 0x4, scoped, tag = 'scoped memory for tpu_custom_call.1']
    #allocation7 [shape = 'u8[16384]{0}', space=vmem, size = 0x4000, scoped, tag = 'input window, operand 2, single buffered']
    #allocation8 [shape = 'u8[524288]{0}', space=vmem, size = 0x80000, scoped, tag = 'input window, operand 3, single buffered']
    #allocation9 [shape = 's32[1]{0}', space=sflag, size = 0x4, scoped, tag = 'scoped memory for tpu_custom_call.1']
    #allocation10 [shape = 'u8[512]{0}', space=smem, size = 0x200, scoped, tag = 'input window, operand 5, single buffered']
    #allocation11 [shape = 'u8[512]{0}', space=smem, size = 0x200, scoped, tag = 'input window, operand 6, single buffered']
    #allocation12 [shape = 's32[1]{0}', space=sflag, size = 0x4, scoped, tag = 'scoped memory for tpu_custom_call.1']
    %12 = vsyncpa [#allocation3], 0
    %13 = vsyncpa [#allocation6], 0
    %14 = vsyncpa [#allocation9], 0
    %15 = vsyncpa [#allocation4], 0
    %16 = vsyncpa [#allocation12], 0
    // Predicated region
    $region2: #{tpu_custom_call.1} parent=1 // pred_check
      _
    $region3: #{tpu_custom_call.1} parent=1 // pred_check_branch
      %18 = sbr.rel (0) target = $region5
    $region4: #{tpu_custom_call.1} parent=1 // pred_region
      %s20 = ssub.s32 64, 64
      %21 = vsyncadd [#allocation3], %s20
      %s23 = sshll.u32 [#allocation2], 4
      %s24 = int_to_ptr.vmem [resolvable:$true] %s23
      %26 = dma.hbm_to_vmem [thread:$0]  %s0, 64, %s24, [#allocation3]
    $region5: #{tpu_custom_call.1} parent=1 // pred_fallthru
      _
    // Predicated region
    $region6: #{tpu_custom_call.1} parent=1 // pred_check
      _
    $region7: #{tpu_custom_call.1} parent=1 // pred_check_branch
      %28 = sbr.rel (0) target = $region9
    $region8: #{tpu_custom_call.1} parent=1 // pred_region
      %s30 = ssub.s32 32, 32
      %31 = vsyncadd [#allocation6], %s30
      %s33 = sshll.u32 [#allocation5], 4
      %s34 = int_to_ptr.vmem [resolvable:$true] %s33
      %36 = dma.hbm_to_vmem [thread:$0]  %s1, 32, %s34, [#allocation6]
    $region9: #{tpu_custom_call.1} parent=1 // pred_fallthru
      _
    // Predicated region
    $region10: #{tpu_custom_call.1} parent=1 // pred_check
      _
    $region11: #{tpu_custom_call.1} parent=1 // pred_check_branch
      %38 = sbr.rel (0) target = $region13
    $region12: #{tpu_custom_call.1} parent=1 // pred_region
      %s40 = ssub.s32 512, 512
      %41 = vsyncadd [#allocation6], %s40
      %s42 = sshll.u32 [#allocation7], 4
      %s43 = int_to_ptr.vmem [resolvable:$true] %s42
      %48 = dma.hbm_to_vmem [thread:$0]  %s2, 512, %s43, [#allocation6], 256, 256, 16
    $region13: #{tpu_custom_call.1} parent=1 // pred_fallthru
      _
    // Predicated region
    $region14: #{tpu_custom_call.1} parent=1 // pred_check
      _
    $region15: #{tpu_custom_call.1} parent=1 // pred_check_branch
      %50 = sbr.rel (0) target = $region17
    $region16: #{tpu_custom_call.1} parent=1 // pred_region
      %s52 = ssub.s32 16384, 16384
      %53 = vsyncadd [#allocation9], %s52
      %s54 = sshll.u32 [#allocation8], 4
      %s55 = int_to_ptr.vmem [resolvable:$true] %s54
      %60 = dma.hbm_to_vmem [thread:$0]  %s3, 16384, %s55, [#allocation9], 512, 512, 32
    $region17: #{tpu_custom_call.1} parent=1 // pred_fallthru
      _
    // Predicated region
    $region18: #{tpu_custom_call.1} parent=1 // pred_check
      _
    $region19: #{tpu_custom_call.1} parent=1 // pred_check_branch
      %62 = sbr.rel (0) target = $region21
    $region20: #{tpu_custom_call.1} parent=1 // pred_region
      _
    $region21: #{tpu_custom_call.1} parent=1 // pred_fallthru
      _
    // Predicated region
    $region22: #{tpu_custom_call.1} parent=1 // pred_check
      _
    $region23: #{tpu_custom_call.1} parent=1 // pred_check_branch
      %64 = sbr.rel (0) target = $region25
    $region24: #{tpu_custom_call.1} parent=1 // pred_region
      %s66 = ssub.s32 16, 16
      %67 = vsyncadd [#allocation4], %s66
      %s69 = sshll.u32 %s5, 4
      %s70 = int_to_ptr.vmem [resolvable:$true] %s69
      %72 = dma.vmem_to_smem %s70, 16, [#allocation10], [#allocation4]
    $region25: #{tpu_custom_call.1} parent=1 // pred_fallthru
      _
    // Predicated region
    $region26: #{tpu_custom_call.1} parent=1 // pred_check
      _
    $region27: #{tpu_custom_call.1} parent=1 // pred_check_branch
      %74 = sbr.rel (0) target = $region29
    $region28: #{tpu_custom_call.1} parent=1 // pred_region
      %s76 = ssub.s32 16, 16
      %77 = vsyncadd [#allocation12], %s76
      %s79 = sshll.u32 %s6, 4
      %s80 = int_to_ptr.vmem [resolvable:$true] %s79
      %82 = dma.vmem_to_smem %s80, 16, [#allocation11], [#allocation12]
    $region29: #{tpu_custom_call.1} parent=1 // pred_fallthru
      _
    // Predicated region
    $region30: #{tpu_custom_call.1} parent=1 // pred_check
      _
    $region31: #{tpu_custom_call.1} parent=1 // pred_check_branch
      %84 = sbr.rel (0) target = $region33
    $region32: #{tpu_custom_call.1} parent=1 // pred_region
      %85 = dma.done [#allocation3], 64
    $region33: #{tpu_custom_call.1} parent=1 // pred_fallthru
      _
    // Predicated region
    $region34: #{tpu_custom_call.1} parent=1 // pred_check
      _
    $region35: #{tpu_custom_call.1} parent=1 // pred_check_branch
      %87 = sbr.rel (0) target = $region37
    $region36: #{tpu_custom_call.1} parent=1 // pred_region
      %88 = dma.done [#allocation6], 32
    $region37: #{tpu_custom_call.1} parent=1 // pred_fallthru
      _
    // Predicated region
    $region38: #{tpu_custom_call.1} parent=1 // pred_check
      _
    $region39: #{tpu_custom_call.1} parent=1 // pred_check_branch
      %90 = sbr.rel (0) target = $region41
    $region40: #{tpu_custom_call.1} parent=1 // pred_region
      %91 = dma.done [#allocation6], 512
    $region41: #{tpu_custom_call.1} parent=1 // pred_fallthru
      _
    // Predicated region
    $region42: #{tpu_custom_call.1} parent=1 // pred_check
      _
    $region43: #{tpu_custom_call.1} parent=1 // pred_check_branch
      %93 = sbr.rel (0) target = $region45
    $region44: #{tpu_custom_call.1} parent=1 // pred_region
      %94 = dma.done [#allocation9], 16384
    $region45: #{tpu_custom_call.1} parent=1 // pred_fallthru
      _
    // Predicated region
    $region46: #{tpu_custom_call.1} parent=1 // pred_check
      _
    $region47: #{tpu_custom_call.1} parent=1 // pred_check_branch
      %96 = sbr.rel (0) target = $region49
    $region48: #{tpu_custom_call.1} parent=1 // pred_region
      %97 = dma.done [#allocation4], 16
    $region49: #{tpu_custom_call.1} parent=1 // pred_fallthru
      _
    // Predicated region
    $region50: #{tpu_custom_call.1} parent=1 // pred_check
      _
    $region51: #{tpu_custom_call.1} parent=1 // pred_check_branch
      %99 = sbr.rel (0) target = $region53
    $region52: #{tpu_custom_call.1} parent=1 // pred_region
      %100 = dma.done [#allocation12], 16
    $region53: #{tpu_custom_call.1} parent=1 // pred_fallthru
      _
    %101 = sfence
    %v102 = vld [vmem:[#allocation2] sm:$0xf]
    %v105 = vunpack.c.l.s4 1983009808
    %v106 = vunpack.c.0.s8 %v105
    %v107 = vlaneseq
    %v108 = vshrl.u32 %v107, 7
    %v109 = vsub.s32 %v106, %v108
    %v110 = vrot.slane %v102, %v109
    %v111 = vcombine.high %v110, %v110
    %vm114 = vcmask 1041408
    %v115 = vsel %vm114, %v110, inf
    %v116 = vsel %vm114, %v111, inf
    %v117 = vmin.f32 %v115, %v116
    %118 = vmin.xlane.f32.xlu0 %v117
    %v119 = vpop.xlane.xlu0 %118
    %v120 = vsel %vm114, %v110, -inf
    %v121 = vsel %vm114, %v111, -inf
    %v122 = vmax.f32 %v120, %v121
    %123 = vmax.xlane.f32.xlu0 %v122
    %v124 = vpop.xlane.xlu0 %123
    %v125 = vsub.f32 %v102, %v119
    %v126 = vsub.f32 %v124, %v119
    %v127 = vadd.f32 %v126, 1e-08
    %v128 = vrcp.pop %v127
    %v129 = vmul.f32 %v125, %v128
    %v130 = vmul.f32 %v129, 1.5707964
    %v131 = vld [vmem:[#allocation7 + $0x11] ss:$0 sm:$0xff]
    %v132 = vld [vmem:[#allocation7 + $0x12] ss:$0 sm:$0xff]
    %v133 = vmul.f32 %v132, %v130
    %v134 = vld [vmem:[#allocation5] sm:$0x3]
    loop: start=0, step=1, limit=25
    $region54: #{tpu_custom_call.1} parent=1 // loop_pre_header
      _
    $region55: #{tpu_custom_call.1} parent=1 // loop_header
      %s136 = sphi 0, %s140
      %p137 = scmp.ge.s32.totalorder %s136, 25
      %v141 = vphi %v134, %v251
      %v142 = vphi 0.0, %v230
      %v143 = vphi 0.0, %v234
    $region56: #{tpu_custom_call.1} parent=1 // loop_header_branch
      %139 = sbr.rel (%p137) target = $region60
    $region57: #{tpu_custom_call.1} parent=1 // loop_body
      %s144 = smul.u32 %s136, 4
      %v145 = vmul.f32 %v131, %v141
      %v146 = vsub.f32 %v145, %v133
      %v147 = vmul.f32 %v142, 0.9
      %v148 = vmul.f32 %v146, 0.1
      %v149 = vadd.f32 %v147, %v148
      %v150 = vmul.f32 %v143, 0.999
      %v151 = vmul.f32 %v146, %v146
      %v152 = vmul.f32 %v151, 0.001
      %v153 = vadd.f32 %v150, %v152
      %v154 = vrsqrt.pop %v153
      %v155 = vmul.f32 %v153, %v154
      %vm156 = vcmp.eq.f32.partialorder %v153, inf
      %v157 = vsel %vm156, %v153, %v155
      %vm158 = vcmp.eq.f32.partialorder %v153, 0.0
      %v159 = vand.u32 %v153, 2147483648
      %v160 = vsel %vm158, %v159, %v157
      %s161 = sld [smem:[#allocation11 + %s144]]
      %v162 = vstv %s161
      %v163 = vmul.f32 %v160, %v162
      %v164 = vadd.f32 %v163, 1e-08
      %s165 = sld [smem:[#allocation10 + %s144]]
      %v166 = vstv %s165
      %v167 = vmul.f32 %v166, %v149
      %v168 = vrcp.pop %v164
      %v169 = vmul.f32 %v167, %v168
      %v170 = vsub.f32 %v141, %v169
      %s171 = sadd.s32 %s144, 1
      %v172 = vmul.f32 %v131, %v170
      %v173 = vsub.f32 %v172, %v133
      %v174 = vmul.f32 %v149, 0.9
      %v175 = vmul.f32 %v173, 0.1
      %v176 = vadd.f32 %v174, %v175
      %v177 = vmul.f32 %v153, 0.999
      %v178 = vmul.f32 %v173, %v173
      %v179 = vmul.f32 %v178, 0.001
      %v180 = vadd.f32 %v177, %v179
      %v181 = vrsqrt.pop %v180
      %v182 = vmul.f32 %v180, %v181
      %vm183 = vcmp.eq.f32.partialorder %v180, inf
      %v184 = vsel %vm183, %v180, %v182
      %vm185 = vcmp.eq.f32.partialorder %v180, 0.0
      %v186 = vand.u32 %v180, 2147483648
      %v187 = vsel %vm185, %v186, %v184
      %s188 = sld [smem:[#allocation11 + %s171]]
      %v189 = vstv %s188
      %v190 = vmul.f32 %v187, %v189
      %v191 = vadd.f32 %v190, 1e-08
      %s192 = sld [smem:[#allocation10 + %s171]]
      %v193 = vstv %s192
      %v194 = vmul.f32 %v193, %v176
      %v195 = vrcp.pop %v191
      %v196 = vmul.f32 %v194, %v195
      %v197 = vsub.f32 %v170, %v196
      %s198 = sadd.s32 %s144, 2
      %v199 = vmul.f32 %v131, %v197
      %v200 = vsub.f32 %v199, %v133
      %v201 = vmul.f32 %v176, 0.9
      %v202 = vmul.f32 %v200, 0.1
      %v203 = vadd.f32 %v201, %v202
      %v204 = vmul.f32 %v180, 0.999
      %v205 = vmul.f32 %v200, %v200
      %v206 = vmul.f32 %v205, 0.001
      %v207 = vadd.f32 %v204, %v206
      %v208 = vrsqrt.pop %v207
      %v209 = vmul.f32 %v207, %v208
      %vm210 = vcmp.eq.f32.partialorder %v207, inf
      %v211 = vsel %vm210, %v207, %v209
      %vm212 = vcmp.eq.f32.partialorder %v207, 0.0
      %v213 = vand.u32 %v207, 2147483648
      %v214 = vsel %vm212, %v213, %v211
      %s215 = sld [smem:[#allocation11 + %s198]]
      %v216 = vstv %s215
      %v217 = vmul.f32 %v214, %v216
      %v218 = vadd.f32 %v217, 1e-08
      %s219 = sld [smem:[#allocation10 + %s198]]
      %v220 = vstv %s219
      %v221 = vmul.f32 %v220, %v203
      %v222 = vrcp.pop %v218
      %v223 = vmul.f32 %v221, %v222
      %v224 = vsub.f32 %v197, %v223
      %s225 = sadd.s32 %s144, 3
      %v226 = vmul.f32 %v131, %v224
      %v227 = vsub.f32 %v226, %v133
      %v228 = vmul.f32 %v203, 0.9
      %v229 = vmul.f32 %v227, 0.1
      %v230 = vadd.f32 %v228, %v229
      %v231 = vmul.f32 %v207, 0.999
      %v232 = vmul.f32 %v227, %v227
      %v233 = vmul.f32 %v232, 0.001
      %v234 = vadd.f32 %v231, %v233
      %v235 = vrsqrt.pop %v234
      %v236 = vmul.f32 %v234, %v235
      %vm237 = vcmp.eq.f32.partialorder %v234, inf
      %v238 = vsel %vm237, %v234, %v236
      %vm239 = vcmp.eq.f32.partialorder %v234, 0.0
      %v240 = vand.u32 %v234, 2147483648
      %v241 = vsel %vm239, %v240, %v238
      %s242 = sld [smem:[#allocation11 + %s225]]
      %v243 = vstv %s242
      %v244 = vmul.f32 %v241, %v243
      %v245 = vadd.f32 %v244, 1e-08
      %s246 = sld [smem:[#allocation10 + %s225]]
      %v247 = vstv %s246
      %v248 = vmul.f32 %v247, %v230
      %v249 = vrcp.pop %v245
      %v250 = vmul.f32 %v248, %v249
      %v251 = vsub.f32 %v224, %v250
    $region58: #{tpu_custom_call.1} parent=1 // loop_footer
      %s140 = sadd.s32 1, %s136
    $region59: #{tpu_custom_call.1} parent=1 // loop_footer_branch
      %135 = sbr.rel target = $region55
    $region60: #{tpu_custom_call.1} parent=1 // loop_exit
      _
    %v252 = vmul.f32 %v141, 0.5
    %v253 = vand.u32 2147483647, %v252
    %vm254 = vcmp.le.f32.partialorder %v253, 0.7853982
    %vm255 = vcmp.lt.s32.totalorder %v252, 0
    %v256 = vand.u32 %v252, 2139095040
    %v257 = vshrl.u32 %v256, 23
    %v258 = vsub.s32 %v257, 127
    %v259 = vand.u32 2147483647, %v252
    %v260 = vand.u32 %v259, 8388607
    %v261 = vor.u32 %v260, 8388608
    %v262 = vsub.s32 0, %v261
    %v263 = vadd.s32 %v258, 1
    %vm264 = vcmp.gt.s32.totalorder %v263, 0
    %v265 = vsel %vm264, %v263, 0
    %v266 = vshrl.u32 %v265, 5
    %v267 = vand.u32 %v265, 31
    %v268 = vsub.s32 32, %v267
    %v269 = vshrl.u32 683565275, %v268
    %v270 = vshll.u32 683565275, %v267
    %v271 = vshrl.u32 2475754826, %v268
    %v272 = vor.u32 %v270, %v271
    %v273 = vshll.u32 2475754826, %v267
    %v274 = vshrl.u32 2131351028, %v268
    %v275 = vor.u32 %v273, %v274
    %v276 = vshll.u32 2131351028, %v267
    %v277 = vshrl.u32 2102212464, %v268
    %v278 = vor.u32 %v276, %v277
    %v279 = vshll.u32 2102212464, %v267
    %v280 = vshrl.u32 920167782, %v268
    %v281 = vor.u32 %v279, %v280
    %v282 = vshll.u32 920167782, %v267
    %v283 = vshrl.u32 1326507024, %v268
    %v284 = vor.u32 %v282, %v283
    %vm285 = vcmp.lt.s32.totalorder %v266, 1
    %vm286 = vcmp.lt.s32.totalorder %v266, 2
    %vm287 = vcmp.lt.s32.totalorder %v266, 3
    %vm288 = vcmp.lt.s32.totalorder %v266, 4
    %v289 = vsel %vm285, %v269, %v272
    %v290 = vsel %vm288, %v278, 2102212464
    %v291 = vsel %vm287, %v275, %v290
    %v292 = vsel %vm286, %v289, %v291
    %v293 = vsel %vm285, %v272, %v275
    %v294 = vsel %vm288, %v281, 920167782
    %v295 = vsel %vm287, %v278, %v294
    %v296 = vsel %vm286, %v293, %v295
    %v297 = vsel %vm285, %v275, %v278
    %v298 = vsel %vm288, %v284, 1326507024
    %v299 = vsel %vm287, %v281, %v298
    %v300 = vsel %vm286, %v297, %v299
    %v301 = vshll.u32 %v261, 8
    %v302 = vmul.u32.u64.compose %v301, %v300
    %v303 = vextract.low.u32 %v302
    %v304 = vextract.high.u32 %v302
    %v305 = vmul.u32.u64.compose %v301, %v296
    %v306 = vextract.low.u32 %v305
    %v307 = vextract.high.u32 %v305
    %v308 = vmul.u32 %v301, %v292
    %v309 = vadd.s32 %v304, %v306
    %vm310 = vc.u32 %v304, %v306
    %v311 = vadd.s32 %v307, 1
    %v312 = vsel %vm310, %v311, %v307
    %v313 = vadd.s32 %v308, %v312
    %v314 = vadd.s32 %v313, 536870912
    %v315 = vshrl.u32 %v314, 30
    %v316 = vshll.u32 %v315, 30
    %v317 = vsub.s32 %v313, %v316
    %vm318 = vcmp.lt.s32.totalorder %v317, 0
    %v319 = vsub.s32 0, %v317
    %v320 = vsel %vm318, %v319, %v317
    %v321 = vclz %v320
    %v322 = vsub.s32 %v321, 2
    %vm323 = vcmp.gt.s32.totalorder 0, %v322
    %v324 = vsel %vm323, 0, %v322
    %v325 = vsub.s32 32, %v324
    %v326 = vshll.u32 %v317, %v324
    %v327 = vshrl.u32 %v309, %v325
    %v328 = vor.u32 %v326, %v327
    %v329 = vsub.s32 4294967266, %v324
    %v330 = vadd.s32 %v329, 127
    %v331 = vshll.u32 %v330, 23
    %v332 = vor.u32 4788187, %v331
    %v333 = vand.u32 2147483647, %v332
    %v335 = vcvt.s32.f32 %v328
    %v336 = vmul.f32 %v335, %v333
    %v337 = vxor.u32 %v336, 2147483648
    %v338 = vsel %vm255, %v337, %v336
    %v339 = vsub.s32 4, %v315
    %v340 = vsel %vm255, %v339, %v315
    %v341 = vsel %vm254, %v252, %v338
    %v342 = vsel %vm254, 0, %v340
    %v343 = vcosq.f32.pop %v341
    %v344 = vsinq.f32.pop %v341
    %vm345 = vweird.f32 %v252
    %v346 = vand.u32 %v342, 3
    %vm347 = vcmp.lt.s32.totalorder %v346, 2
    %vm348 = vcmp.eq.s32.totalorder %v346, 0
    %v349 = vxor.u32 %v344, 2147483648
    %v350 = vsel %vm348, %v343, %v349
    %vm351 = vcmp.eq.s32.totalorder %v346, 2
    %v352 = vxor.u32 %v343, 2147483648
    %v353 = vsel %vm351, %v352, %v344
    %v354 = vsel %vm347, %v350, %v353
    %v355 = vsel %vm345, nan, %v354
    %v356 = vand.u32 2147483647, %v252
    %vm357 = vcmp.le.f32.partialorder %v356, 0.7853982
    %vm358 = vcmp.lt.s32.totalorder %v252, 0
    %v359 = vand.u32 %v252, 2139095040
    %v360 = vshrl.u32 %v359, 23
    %v361 = vsub.s32 %v360, 127
    %v362 = vand.u32 2147483647, %v252
    %v363 = vand.u32 %v362, 8388607
    %v364 = vor.u32 %v363, 8388608
    %v365 = vsub.s32 0, %v364
    %v366 = vadd.s32 %v361, 1
    %vm367 = vcmp.gt.s32.totalorder %v366, 0
    %v368 = vsel %vm367, %v366, 0
    %v369 = vshrl.u32 %v368, 5
    %v370 = vand.u32 %v368, 31
    %v371 = vsub.s32 32, %v370
    %v372 = vshrl.u32 683565275, %v371
    %v373 = vshll.u32 683565275, %v370
    %v374 = vshrl.u32 2475754826, %v371
    %v375 = vor.u32 %v373, %v374
    %v376 = vshll.u32 2475754826, %v370
    %v377 = vshrl.u32 2131351028, %v371
    %v378 = vor.u32 %v376, %v377
    %v379 = vshll.u32 2131351028, %v370
    %v380 = vshrl.u32 2102212464, %v371
    %v381 = vor.u32 %v379, %v380
    %v382 = vshll.u32 2102212464, %v370
    %v383 = vshrl.u32 920167782, %v371
    %v384 = vor.u32 %v382, %v383
    %v385 = vshll.u32 920167782, %v370
    %v386 = vshrl.u32 1326507024, %v371
    %v387 = vor.u32 %v385, %v386
    %vm388 = vcmp.lt.s32.totalorder %v369, 1
    %vm389 = vcmp.lt.s32.totalorder %v369, 2
    %vm390 = vcmp.lt.s32.totalorder %v369, 3
    %vm391 = vcmp.lt.s32.totalorder %v369, 4
    %v392 = vsel %vm388, %v372, %v375
    %v393 = vsel %vm391, %v381, 2102212464
    %v394 = vsel %vm390, %v378, %v393
    %v395 = vsel %vm389, %v392, %v394
    %v396 = vsel %vm388, %v375, %v378
    %v397 = vsel %vm391, %v384, 920167782
    %v398 = vsel %vm390, %v381, %v397
    %v399 = vsel %vm389, %v396, %v398
    %v400 = vsel %vm388, %v378, %v381
    %v401 = vsel %vm391, %v387, 1326507024
    %v402 = vsel %vm390, %v384, %v401
    %v403 = vsel %vm389, %v400, %v402
    %v404 = vshll.u32 %v364, 8
    %v405 = vmul.u32.u64.compose %v404, %v403
    %v406 = vextract.low.u32 %v405
    %v407 = vextract.high.u32 %v405
    %v408 = vmul.u32.u64.compose %v404, %v399
    %v409 = vextract.low.u32 %v408
    %v410 = vextract.high.u32 %v408
    %v411 = vmul.u32 %v404, %v395
    %v412 = vadd.s32 %v407, %v409
    %vm413 = vc.u32 %v407, %v409
    %v414 = vadd.s32 %v410, 1
    %v415 = vsel %vm413, %v414, %v410
    %v416 = vadd.s32 %v411, %v415
    %v417 = vadd.s32 %v416, 536870912
    %v418 = vshrl.u32 %v417, 30
    %v419 = vshll.u32 %v418, 30
    %v420 = vsub.s32 %v416, %v419
    %vm421 = vcmp.lt.s32.totalorder %v420, 0
    %v422 = vsub.s32 0, %v420
    %v423 = vsel %vm421, %v422, %v420
    %v424 = vclz %v423
    %v425 = vsub.s32 %v424, 2
    %vm426 = vcmp.gt.s32.totalorder 0, %v425
    %v427 = vsel %vm426, 0, %v425
    %v428 = vsub.s32 32, %v427
    %v429 = vshll.u32 %v420, %v427
    %v430 = vshrl.u32 %v412, %v428
    %v431 = vor.u32 %v429, %v430
    %v432 = vsub.s32 4294967266, %v427
    %v433 = vadd.s32 %v432, 127
    %v434 = vshll.u32 %v433, 23
    %v435 = vor.u32 4788187, %v434
    %v436 = vand.u32 2147483647, %v435
    %v438 = vcvt.s32.f32 %v431
    %v439 = vmul.f32 %v438, %v436
    %v440 = vxor.u32 %v439, 2147483648
    %v441 = vsel %vm358, %v440, %v439
    %v442 = vsub.s32 4, %v418
    %v443 = vsel %vm358, %v442, %v418
    %v444 = vsel %vm357, %v252, %v441
    %v445 = vsel %vm357, 0, %v443
    %v446 = vcosq.f32.pop %v444
    %v447 = vsinq.f32.pop %v444
    %vm448 = vweird.f32 %v252
    %v449 = vadd.s32 %v445, 3
    %v450 = vand.u32 %v449, 3
    %vm451 = vcmp.lt.s32.totalorder %v450, 2
    %vm452 = vcmp.eq.s32.totalorder %v450, 0
    %v453 = vxor.u32 %v447, 2147483648
    %v454 = vsel %vm452, %v446, %v453
    %vm455 = vcmp.eq.s32.totalorder %v450, 2
    %v456 = vxor.u32 %v446, 2147483648
    %v457 = vsel %vm455, %v456, %v447
    %v458 = vsel %vm451, %v454, %v457
    %v459 = vsel %vm448, nan, %v458
    %v460 = vld [vmem:[#allocation7] ss:$8 sm:$0x3]
    %v461 = vsub.f32 %v459, %v355
    %v463 = vlaneseq
    %v464 = vshrl.u32 %v463, 7
    %v465 = vsub.s32 0, %v464
    %v466 = vrot.slane %v460, %v465
    %v467 = vlaneseq
    %v468 = vshrl.u32 %v467, 7
    %v469 = vsub.s32 1, %v468
    %v470 = vrot.slane %v460, %v469
    %474 = vset.pattern.permute.xlu0 0
    %475 = vperm.xlu0 %474, %v461
    %v476 = vpop.permute.xlu0 %475
    %v478 = vmul.f32 %v466, %v476
    %v479 = vmul.f32 %v470, %v476
    %481 = vset.pattern.permute.xlu0 0
    %482 = vperm.xlu0 %481, %v355
    %v483 = vpop.permute.xlu0 %482
    %v485 = vadd.f32 %v483, %v478
    %v486 = vadd.f32 %v483, %v479
    %s487 = scalar_lea.vmem [#allocation7], 1
    %v488 = vld [vmem:[%s487] ss:$8 sm:$0x3]
    %v490 = vlaneseq
    %v491 = vshrl.u32 %v490, 7
    %v492 = vsub.s32 0, %v491
    %v493 = vrot.slane %v488, %v492
    %v494 = vlaneseq
    %v495 = vshrl.u32 %v494, 7
    %v496 = vsub.s32 1, %v495
    %v497 = vrot.slane %v488, %v496
    %500 = vset.pattern.permute.xlu0 1
    %501 = vperm.xlu0 %500, %v461
    %v502 = vpop.permute.xlu0 %501
    %v504 = vmul.f32 %v493, %v502
    %v505 = vmul.f32 %v497, %v502
    %506 = vset.pattern.permute.xlu0 1
    %507 = vperm.xlu0 %506, %v355
    %v508 = vpop.permute.xlu0 %507
    %v510 = vadd.f32 %v508, %v504
    %v511 = vadd.f32 %v508, %v505
    %v512 = vmul.f32 %v485, %v510
    %v513 = vmul.f32 %v486, %v511
    %s514 = scalar_lea.vmem [#allocation7], 2
    %v515 = vld [vmem:[%s514] ss:$8 sm:$0x3]
    %v517 = vlaneseq
    %v518 = vshrl.u32 %v517, 7
    %v519 = vsub.s32 0, %v518
    %v520 = vrot.slane %v515, %v519
    %v521 = vlaneseq
    %v522 = vshrl.u32 %v521, 7
    %v523 = vsub.s32 1, %v522
    %v524 = vrot.slane %v515, %v523
    %527 = vset.pattern.permute.xlu0 2
    %528 = vperm.xlu0 %527, %v461
    %v529 = vpop.permute.xlu0 %528
    %v531 = vmul.f32 %v520, %v529
    %v532 = vmul.f32 %v524, %v529
    %533 = vset.pattern.permute.xlu0 2
    %534 = vperm.xlu0 %533, %v355
    %v535 = vpop.permute.xlu0 %534
    %v537 = vadd.f32 %v535, %v531
    %v538 = vadd.f32 %v535, %v532
    %v539 = vmul.f32 %v512, %v537
    %v540 = vmul.f32 %v513, %v538
    %s541 = scalar_lea.vmem [#allocation7], 3
    %v542 = vld [vmem:[%s541] ss:$8 sm:$0x3]
    %v544 = vlaneseq
    %v545 = vshrl.u32 %v544, 7
    %v546 = vsub.s32 0, %v545
    %v547 = vrot.slane %v542, %v546
    %v548 = vlaneseq
    %v549 = vshrl.u32 %v548, 7
    %v550 = vsub.s32 1, %v549
    %v551 = vrot.slane %v542, %v550
    %554 = vset.pattern.permute.xlu0 3
    %555 = vperm.xlu0 %554, %v461
    %v556 = vpop.permute.xlu0 %555
    %v558 = vmul.f32 %v547, %v556
    %v559 = vmul.f32 %v551, %v556
    %560 = vset.pattern.permute.xlu0 3
    %561 = vperm.xlu0 %560, %v355
    %v562 = vpop.permute.xlu0 %561
    %v564 = vadd.f32 %v562, %v558
    %v565 = vadd.f32 %v562, %v559
    %v566 = vmul.f32 %v539, %v564
    %v567 = vmul.f32 %v540, %v565
    %s568 = scalar_lea.vmem [#allocation7], 4
    %v569 = vld [vmem:[%s568] ss:$8 sm:$0x3]
    %v571 = vlaneseq
    %v572 = vshrl.u32 %v571, 7
    %v573 = vsub.s32 0, %v572
    %v574 = vrot.slane %v569, %v573
    %v575 = vlaneseq
    %v576 = vshrl.u32 %v575, 7
    %v577 = vsub.s32 1, %v576
    %v578 = vrot.slane %v569, %v577
    %581 = vset.pattern.permute.xlu0 4
    %582 = vperm.xlu0 %581, %v461
    %v583 = vpop.permute.xlu0 %582
    %v585 = vmul.f32 %v574, %v583
    %v586 = vmul.f32 %v578, %v583
    %587 = vset.pattern.permute.xlu0 4
    %588 = vperm.xlu0 %587, %v355
    %v589 = vpop.permute.xlu0 %588
    %v591 = vadd.f32 %v589, %v585
    %v592 = vadd.f32 %v589, %v586
    %v593 = vmul.f32 %v566, %v591
    %v594 = vmul.f32 %v567, %v592
    %s595 = scalar_lea.vmem [#allocation7], 5
    %v596 = vld [vmem:[%s595] ss:$8 sm:$0x3]
    %v598 = vlaneseq
    %v599 = vshrl.u32 %v598, 7
    %v600 = vsub.s32 0, %v599
    %v601 = vrot.slane %v596, %v600
    %v602 = vlaneseq
    %v603 = vshrl.u32 %v602, 7
    %v604 = vsub.s32 1, %v603
    %v605 = vrot.slane %v596, %v604
    %608 = vset.pattern.permute.xlu0 5
    %609 = vperm.xlu0 %608, %v461
    %v610 = vpop.permute.xlu0 %609
    %v612 = vmul.f32 %v601, %v610
    %v613 = vmul.f32 %v605, %v610
    %614 = vset.pattern.permute.xlu0 5
    %615 = vperm.xlu0 %614, %v355
    %v616 = vpop.permute.xlu0 %615
    %v618 = vadd.f32 %v616, %v612
    %v619 = vadd.f32 %v616, %v613
    %v620 = vmul.f32 %v593, %v618
    %v621 = vmul.f32 %v594, %v619
    %s622 = scalar_lea.vmem [#allocation7], 6
    %v623 = vld [vmem:[%s622] ss:$8 sm:$0x3]
    %v625 = vlaneseq
    %v626 = vshrl.u32 %v625, 7
    %v627 = vsub.s32 0, %v626
    %v628 = vrot.slane %v623, %v627
    %v629 = vlaneseq
    %v630 = vshrl.u32 %v629, 7
    %v631 = vsub.s32 1, %v630
    %v632 = vrot.slane %v623, %v631
    %635 = vset.pattern.permute.xlu0 6
    %636 = vperm.xlu0 %635, %v461
    %v637 = vpop.permute.xlu0 %636
    %v639 = vmul.f32 %v628, %v637
    %v640 = vmul.f32 %v632, %v637
    %641 = vset.pattern.permute.xlu0 6
    %642 = vperm.xlu0 %641, %v355
    %v643 = vpop.permute.xlu0 %642
    %v645 = vadd.f32 %v643, %v639
    %v646 = vadd.f32 %v643, %v640
    %v647 = vmul.f32 %v620, %v645
    %v648 = vmul.f32 %v621, %v646
    %s649 = scalar_lea.vmem [#allocation7], 7
    %v650 = vld [vmem:[%s649] ss:$8 sm:$0x3]
    %v652 = vlaneseq
    %v653 = vshrl.u32 %v652, 7
    %v654 = vsub.s32 0, %v653
    %v655 = vrot.slane %v650, %v654
    %v656 = vlaneseq
    %v657 = vshrl.u32 %v656, 7
    %v658 = vsub.s32 1, %v657
    %v659 = vrot.slane %v650, %v658
    %662 = vset.pattern.permute.xlu0 7
    %663 = vperm.xlu0 %662, %v461
    %v664 = vpop.permute.xlu0 %663
    %v666 = vmul.f32 %v655, %v664
    %v667 = vmul.f32 %v659, %v664
    %668 = vset.pattern.permute.xlu0 7
    %669 = vperm.xlu0 %668, %v355
    %v670 = vpop.permute.xlu0 %669
    %v672 = vadd.f32 %v670, %v666
    %v673 = vadd.f32 %v670, %v667
    %v674 = vmul.f32 %v647, %v672
    %v675 = vmul.f32 %v648, %v673
    %v676 = vld [vmem:[#allocation8] sm:$0xff]
    %v677 = vld [vmem:[#allocation8 + $0x8] sm:$0xff]
    %v678 = vld [vmem:[#allocation8 + $0x10] sm:$0xff]
    %v679 = vld [vmem:[#allocation8 + $0x18] sm:$0xff]
    %v680 = vld [vmem:[#allocation8 + $0x20] sm:$0xff]
    %v681 = vld [vmem:[#allocation8 + $0x28] sm:$0xff]
    %v682 = vld [vmem:[#allocation8 + $0x30] sm:$0xff]
    %v683 = vld [vmem:[#allocation8 + $0x38] sm:$0xff]
    %v684 = vld [vmem:[#allocation8 + $0x40] sm:$0xff]
    %v685 = vld [vmem:[#allocation8 + $0x48] sm:$0xff]
    %v686 = vld [vmem:[#allocation8 + $0x50] sm:$0xff]
    %v687 = vld [vmem:[#allocation8 + $0x58] sm:$0xff]
    %v688 = vld [vmem:[#allocation8 + $0x60] sm:$0xff]
    %v689 = vld [vmem:[#allocation8 + $0x68] sm:$0xff]
    %v690 = vld [vmem:[#allocation8 + $0x70] sm:$0xff]
    %v691 = vld [vmem:[#allocation8 + $0x78] sm:$0xff]
    %v692 = vld [vmem:[#allocation8 + $0x80] sm:$0xff]
    %v693 = vld [vmem:[#allocation8 + $0x88] sm:$0xff]
    %v694 = vld [vmem:[#allocation8 + $0x90] sm:$0xff]
    %v695 = vld [vmem:[#allocation8 + $0x98] sm:$0xff]
    %v696 = vld [vmem:[#allocation8 + $0xa0] sm:$0xff]
    %v697 = vld [vmem:[#allocation8 + $0xa8] sm:$0xff]
    %v698 = vld [vmem:[#allocation8 + $0xb0] sm:$0xff]
    %v699 = vld [vmem:[#allocation8 + $0xb8] sm:$0xff]
    %v700 = vld [vmem:[#allocation8 + $0xc0] sm:$0xff]
    %v701 = vld [vmem:[#allocation8 + $0xc8] sm:$0xff]
    %v702 = vld [vmem:[#allocation8 + $0xd0] sm:$0xff]
    %v703 = vld [vmem:[#allocation8 + $0xd8] sm:$0xff]
    %v704 = vld [vmem:[#allocation8 + $0xe0] sm:$0xff]
    %v705 = vld [vmem:[#allocation8 + $0xe8] sm:$0xff]
    %v706 = vld [vmem:[#allocation8 + $0xf0] sm:$0xff]
    %v707 = vld [vmem:[#allocation8 + $0xf8] sm:$0xff]
    %v708 = vld [vmem:[#allocation8 + $0x100] sm:$0xff]
    %v709 = vld [vmem:[#allocation8 + $0x108] sm:$0xff]
    %v710 = vld [vmem:[#allocation8 + $0x110] sm:$0xff]
    %v711 = vld [vmem:[#allocation8 + $0x118] sm:$0xff]
    %v712 = vld [vmem:[#allocation8 + $0x120] sm:$0xff]
    %v713 = vld [vmem:[#allocation8 + $0x128] sm:$0xff]
    %v714 = vld [vmem:[#allocation8 + $0x130] sm:$0xff]
    %v715 = vld [vmem:[#allocation8 + $0x138] sm:$0xff]
    %v716 = vld [vmem:[#allocation8 + $0x140] sm:$0xff]
    %v717 = vld [vmem:[#allocation8 + $0x148] sm:$0xff]
    %v718 = vld [vmem:[#allocation8 + $0x150] sm:$0xff]
    %v719 = vld [vmem:[#allocation8 + $0x158] sm:$0xff]
    %v720 = vld [vmem:[#allocation8 + $0x160] sm:$0xff]
    %v721 = vld [vmem:[#allocation8 + $0x168] sm:$0xff]
    %v722 = vld [vmem:[#allocation8 + $0x170] sm:$0xff]
    %v723 = vld [vmem:[#allocation8 + $0x178] sm:$0xff]
    %v724 = vld [vmem:[#allocation8 + $0x180] sm:$0xff]
    %v725 = vld [vmem:[#allocation8 + $0x188] sm:$0xff]
    %v726 = vld [vmem:[#allocation8 + $0x190] sm:$0xff]
    %v727 = vld [vmem:[#allocation8 + $0x198] sm:$0xff]
    %v728 = vld [vmem:[#allocation8 + $0x1a0] sm:$0xff]
    %v729 = vld [vmem:[#allocation8 + $0x1a8] sm:$0xff]
    %v730 = vld [vmem:[#allocation8 + $0x1b0] sm:$0xff]
    %v731 = vld [vmem:[#allocation8 + $0x1b8] sm:$0xff]
    %v732 = vld [vmem:[#allocation8 + $0x1c0] sm:$0xff]
    %v733 = vld [vmem:[#allocation8 + $0x1c8] sm:$0xff]
    %v734 = vld [vmem:[#allocation8 + $0x1d0] sm:$0xff]
    %v735 = vld [vmem:[#allocation8 + $0x1d8] sm:$0xff]
    %v736 = vld [vmem:[#allocation8 + $0x1e0] sm:$0xff]
    %v737 = vld [vmem:[#allocation8 + $0x1e8] sm:$0xff]
    %v738 = vld [vmem:[#allocation8 + $0x1f0] sm:$0xff]
    %v739 = vld [vmem:[#allocation8 + $0x1f8] sm:$0xff]
    %v740 = vld [vmem:[#allocation8 + $0x200] sm:$0xff]
    %v741 = vld [vmem:[#allocation8 + $0x208] sm:$0xff]
    %v742 = vld [vmem:[#allocation8 + $0x210] sm:$0xff]
    %v743 = vld [vmem:[#allocation8 + $0x218] sm:$0xff]
    %v744 = vld [vmem:[#allocation8 + $0x220] sm:$0xff]
    %v745 = vld [vmem:[#allocation8 + $0x228] sm:$0xff]
    %v746 = vld [vmem:[#allocation8 + $0x230] sm:$0xff]
    %v747 = vld [vmem:[#allocation8 + $0x238] sm:$0xff]
    %v748 = vld [vmem:[#allocation8 + $0x240] sm:$0xff]
    %v749 = vld [vmem:[#allocation8 + $0x248] sm:$0xff]
    %v750 = vld [vmem:[#allocation8 + $0x250] sm:$0xff]
    %v751 = vld [vmem:[#allocation8 + $0x258] sm:$0xff]
    %v752 = vld [vmem:[#allocation8 + $0x260] sm:$0xff]
    %v753 = vld [vmem:[#allocation8 + $0x268] sm:$0xff]
    %v754 = vld [vmem:[#allocation8 + $0x270] sm:$0xff]
    %v755 = vld [vmem:[#allocation8 + $0x278] sm:$0xff]
    %v756 = vld [vmem:[#allocation8 + $0x280] sm:$0xff]
    %v757 = vld [vmem:[#allocation8 + $0x288] sm:$0xff]
    %v758 = vld [vmem:[#allocation8 + $0x290] sm:$0xff]
    %v759 = vld [vmem:[#allocation8 + $0x298] sm:$0xff]
    %v760 = vld [vmem:[#allocation8 + $0x2a0] sm:$0xff]
    %v761 = vld [vmem:[#allocation8 + $0x2a8] sm:$0xff]
    %v762 = vld [vmem:[#allocation8 + $0x2b0] sm:$0xff]
    %v763 = vld [vmem:[#allocation8 + $0x2b8] sm:$0xff]
    %v764 = vld [vmem:[#allocation8 + $0x2c0] sm:$0xff]
    %v765 = vld [vmem:[#allocation8 + $0x2c8] sm:$0xff]
    %v766 = vld [vmem:[#allocation8 + $0x2d0] sm:$0xff]
    %v767 = vld [vmem:[#allocation8 + $0x2d8] sm:$0xff]
    %v768 = vld [vmem:[#allocation8 + $0x2e0] sm:$0xff]
    %v769 = vld [vmem:[#allocation8 + $0x2e8] sm:$0xff]
    %v770 = vld [vmem:[#allocation8 + $0x2f0] sm:$0xff]
    %v771 = vld [vmem:[#allocation8 + $0x2f8] sm:$0xff]
    %v772 = vld [vmem:[#allocation8 + $0x300] sm:$0xff]
    %v773 = vld [vmem:[#allocation8 + $0x308] sm:$0xff]
    %v774 = vld [vmem:[#allocation8 + $0x310] sm:$0xff]
    %v775 = vld [vmem:[#allocation8 + $0x318] sm:$0xff]
    %v776 = vld [vmem:[#allocation8 + $0x320] sm:$0xff]
    %v777 = vld [vmem:[#allocation8 + $0x328] sm:$0xff]
    %v778 = vld [vmem:[#allocation8 + $0x330] sm:$0xff]
    %v779 = vld [vmem:[#allocation8 + $0x338] sm:$0xff]
    %v780 = vld [vmem:[#allocation8 + $0x340] sm:$0xff]
    %v781 = vld [vmem:[#allocation8 + $0x348] sm:$0xff]
    %v782 = vld [vmem:[#allocation8 + $0x350] sm:$0xff]
    %v783 = vld [vmem:[#allocation8 + $0x358] sm:$0xff]
    %v784 = vld [vmem:[#allocation8 + $0x360] sm:$0xff]
    %v785 = vld [vmem:[#allocation8 + $0x368] sm:$0xff]
    %v786 = vld [vmem:[#allocation8 + $0x370] sm:$0xff]
    %v787 = vld [vmem:[#allocation8 + $0x378] sm:$0xff]
    %v788 = vld [vmem:[#allocation8 + $0x380] sm:$0xff]
    %v789 = vld [vmem:[#allocation8 + $0x388] sm:$0xff]
    %v790 = vld [vmem:[#allocation8 + $0x390] sm:$0xff]
    %v791 = vld [vmem:[#allocation8 + $0x398] sm:$0xff]
    %v792 = vld [vmem:[#allocation8 + $0x3a0] sm:$0xff]
    %v793 = vld [vmem:[#allocation8 + $0x3a8] sm:$0xff]
    %v794 = vld [vmem:[#allocation8 + $0x3b0] sm:$0xff]
    %v795 = vld [vmem:[#allocation8 + $0x3b8] sm:$0xff]
    %v796 = vld [vmem:[#allocation8 + $0x3c0] sm:$0xff]
    %v797 = vld [vmem:[#allocation8 + $0x3c8] sm:$0xff]
    %v798 = vld [vmem:[#allocation8 + $0x3d0] sm:$0xff]
    %v799 = vld [vmem:[#allocation8 + $0x3d8] sm:$0xff]
    %v800 = vld [vmem:[#allocation8 + $0x3e0] sm:$0xff]
    %v801 = vld [vmem:[#allocation8 + $0x3e8] sm:$0xff]
    %v802 = vld [vmem:[#allocation8 + $0x3f0] sm:$0xff]
    %v803 = vld [vmem:[#allocation8 + $0x3f8] sm:$0xff]
    %804 = vmatprep.subr.mxu0 %v737
    %805 = vmatpush1.msra.mxu0 %v736
    %806 = vmatprep.subr.mxu0 %v733
    %807 = vmatpush1.msra.mxu0 %v732
    %808 = vmatprep.subr.mxu0 %v729
    %809 = vmatpush1.msra.mxu0 %v728
    %810 = vmatprep.subr.mxu0 %v725
    %811 = vmatpush1.msra.mxu0 %v724
    %812 = vmatprep.subr.mxu0 %v721
    %813 = vmatpush1.msra.mxu0 %v720
    %814 = vmatprep.subr.mxu0 %v717
    %815 = vmatpush1.msra.mxu0 %v716
    %816 = vmatprep.subr.mxu0 %v713
    %817 = vmatpush1.msra.mxu0 %v712
    %818 = vmatprep.subr.mxu0 %v709
    %819 = vmatpush1.msra.mxu0 %v708
    %820 = vmatprep.subr.mxu0 %v705
    %821 = vmatpush1.msra.mxu0 %v704
    %822 = vmatprep.subr.mxu0 %v701
    %823 = vmatpush1.msra.mxu0 %v700
    %824 = vmatprep.subr.mxu0 %v697
    %825 = vmatpush1.msra.mxu0 %v696
    %826 = vmatprep.subr.mxu0 %v693
    %827 = vmatpush1.msra.mxu0 %v692
    %828 = vmatprep.subr.mxu0 %v689
    %829 = vmatpush1.msra.mxu0 %v688
    %830 = vmatprep.subr.mxu0 %v685
    %831 = vmatpush1.msra.mxu0 %v684
    %832 = vmatprep.subr.mxu0 %v681
    %833 = vmatpush1.msra.mxu0 %v680
    %834 = vmatprep.subr.mxu0 %v677
    %835 = vmatpush1.msra.mxu0 %v676
    %836 = vmatprep.subr.mxu0 %v801
    %837 = vmatpush2.msra.mxu0 %v800
    %838 = vmatprep.subr.mxu0 %v797
    %839 = vmatpush2.msra.mxu0 %v796
    %840 = vmatprep.subr.mxu0 %v793
    %841 = vmatpush2.msra.mxu0 %v792
    %842 = vmatprep.subr.mxu0 %v789
    %843 = vmatpush2.msra.mxu0 %v788
    %844 = vmatprep.subr.mxu0 %v785
    %845 = vmatpush2.msra.mxu0 %v784
    %846 = vmatprep.subr.mxu0 %v781
    %847 = vmatpush2.msra.mxu0 %v780
    %848 = vmatprep.subr.mxu0 %v777
    %849 = vmatpush2.msra.mxu0 %v776
    %850 = vmatprep.subr.mxu0 %v773
    %851 = vmatpush2.msra.mxu0 %v772
    %852 = vmatprep.subr.mxu0 %v769
    %853 = vmatpush2.msra.mxu0 %v768
    %854 = vmatprep.subr.mxu0 %v765
    %855 = vmatpush2.msra.mxu0 %v764
    %856 = vmatprep.subr.mxu0 %v761
    %857 = vmatpush2.msra.mxu0 %v760
    %858 = vmatprep.subr.mxu0 %v757
    %859 = vmatpush2.msra.mxu0 %v756
    %860 = vmatprep.subr.mxu0 %v753
    %861 = vmatpush2.msra.mxu0 %v752
    %862 = vmatprep.subr.mxu0 %v749
    %863 = vmatpush2.msra.mxu0 %v748
    %864 = vmatprep.subr.mxu0 %v745
    %865 = vmatpush2.msra.mxu0 %v744
    %866 = vmatprep.subr.mxu0 %v741
    %867 = vmatpush2.msra.mxu0 %v740
    %868 = vmatprep.mubr.f32.mxu0 %v675
    %869 = vmatmul.mubr.f32.gmra.mxu0 %v674
    %v870 = vpop.f32.mrf.mxu0
    %v871 = vadd.f32 0.0, %v870
    %v872 = vpop.f32.mrf.mxu0
    %v873 = vadd.f32 0.0, %v872
    %874 = vdwg.mxu0
    %875 = vmatprep.subr.mxu0 %v739
    %876 = vmatpush1.msra.mxu0 %v738
    %877 = vmatprep.subr.mxu0 %v735
    %878 = vmatpush1.msra.mxu0 %v734
    %879 = vmatprep.subr.mxu0 %v731
    %880 = vmatpush1.msra.mxu0 %v730
    %881 = vmatprep.subr.mxu0 %v727
    %882 = vmatpush1.msra.mxu0 %v726
    %883 = vmatprep.subr.mxu0 %v723
    %884 = vmatpush1.msra.mxu0 %v722
    %885 = vmatprep.subr.mxu0 %v719
    %886 = vmatpush1.msra.mxu0 %v718
    %887 = vmatprep.subr.mxu0 %v715
    %888 = vmatpush1.msra.mxu0 %v714
    %889 = vmatprep.subr.mxu0 %v711
    %890 = vmatpush1.msra.mxu0 %v710
    %891 = vmatprep.subr.mxu0 %v707
    %892 = vmatpush1.msra.mxu0 %v706
    %893 = vmatprep.subr.mxu0 %v703
    %894 = vmatpush1.msra.mxu0 %v702
    %895 = vmatprep.subr.mxu0 %v699
    %896 = vmatpush1.msra.mxu0 %v698
    %897 = vmatprep.subr.mxu0 %v695
    %898 = vmatpush1.msra.mxu0 %v694
    %899 = vmatprep.subr.mxu0 %v691
    %900 = vmatpush1.msra.mxu0 %v690
    %901 = vmatprep.subr.mxu0 %v687
    %902 = vmatpush1.msra.mxu0 %v686
    %903 = vmatprep.subr.mxu0 %v683
    %904 = vmatpush1.msra.mxu0 %v682
    %905 = vmatprep.subr.mxu0 %v679
    %906 = vmatpush1.msra.mxu0 %v678
    %907 = vmatprep.subr.mxu0 %v803
    %908 = vmatpush2.msra.mxu0 %v802
    %909 = vmatprep.subr.mxu0 %v799
    %910 = vmatpush2.msra.mxu0 %v798
    %911 = vmatprep.subr.mxu0 %v795
    %912 = vmatpush2.msra.mxu0 %v794
    %913 = vmatprep.subr.mxu0 %v791
    %914 = vmatpush2.msra.mxu0 %v790
    %915 = vmatprep.subr.mxu0 %v787
    %916 = vmatpush2.msra.mxu0 %v786
    %917 = vmatprep.subr.mxu0 %v783
    %918 = vmatpush2.msra.mxu0 %v782
    %919 = vmatprep.subr.mxu0 %v779
    %920 = vmatpush2.msra.mxu0 %v778
    %921 = vmatprep.subr.mxu0 %v775
    %922 = vmatpush2.msra.mxu0 %v774
    %923 = vmatprep.subr.mxu0 %v771
    %924 = vmatpush2.msra.mxu0 %v770
    %925 = vmatprep.subr.mxu0 %v767
    %926 = vmatpush2.msra.mxu0 %v766
    %927 = vmatprep.subr.mxu0 %v763
    %928 = vmatpush2.msra.mxu0 %v762
    %929 = vmatprep.subr.mxu0 %v759
    %930 = vmatpush2.msra.mxu0 %v758
    %931 = vmatprep.subr.mxu0 %v755
    %932 = vmatpush2.msra.mxu0 %v754
    %933 = vmatprep.subr.mxu0 %v751
    %934 = vmatpush2.msra.mxu0 %v750
    %935 = vmatprep.subr.mxu0 %v747
    %936 = vmatpush2.msra.mxu0 %v746
    %937 = vmatprep.subr.mxu0 %v743
    %938 = vmatpush2.msra.mxu0 %v742
    %939 = vmatprep.mubr.f32.mxu0 %v675
    %940 = vmatmul.mubr.f32.gmra.mxu0 %v674
    %v941 = vpop.f32.mrf.mxu0
    %v942 = vadd.f32 0.0, %v941
    %v943 = vpop.f32.mrf.mxu0
    %v944 = vadd.f32 0.0, %v943
    %945 = vdwg.mxu0
    %v946 = vmul.f32 %v871, %v871
    %v947 = vmul.f32 %v873, %v873
    %v948 = vmul.f32 %v942, %v942
    %v949 = vmul.f32 %v944, %v944
    %v950 = vadd.f32 %v946, %v948
    %v951 = vadd.f32 %v947, %v949
    %s952 = scalar_lea.vmem [#allocation7], 16
    %v953 = vld [vmem:[%s952] ss:$8 sm:$0x3]
    %v955 = vlaneseq
    %v956 = vshrl.u32 %v955, 7
    %v957 = vsub.s32 0, %v956
    %v958 = vrot.slane %v953, %v957
    %v959 = vlaneseq
    %v960 = vshrl.u32 %v959, 7
    %v961 = vsub.s32 1, %v960
    %v962 = vrot.slane %v953, %v961
    %v965 = vmul.f32 %v950, %v958
    %v966 = vmul.f32 %v951, %v962
    %v967 = vsel %vm114, %v965, 0.0
    %v968 = vsel %vm114, %v966, 0.0
    %v969 = vadd.f32 %v967, %v968
    %970 = vadd.xlane.f32.xlu0 %v969
    %v971 = vpop.xlane.xlu0 %970
    %v972 = vld [vmem:[%s4] sm:$0x1]
    %v974 = vlaneseq
    %v975 = vshrl.u32 %v974, 7
    %v976 = vsub.s32 0, %v975
    %v977 = vrot.slane %v972, %v976
    %v979 = vmul.f32 %v971, %v977
    %980 = vrot.lane.b32.xlu0 %v977, 112
    %v981 = vpop.permute.xlu0 %980
    %v983 = vadd.f32 %v979, %v981
    %v984 = vmax.f32 %v983, 0.0
    %985 = vrot.lane.b32.xlu0 %v977, 96
    %v986 = vpop.permute.xlu0 %985
    %v988 = vmul.f32 %v984, %v986
    %vm989 = vcmask 123904
    %v990 = vsel %vm989, %v988, 0.0
    %991 = vadd.xlane.f32.xlu0 %v990
    %v992 = vpop.xlane.xlu0 %991
    %v993 = vadd.f32 %v992, %v977
    %995 = vrot.lane.b32.xlu0 %v993, 80
    %v996 = vpop.permute.xlu0 %995
    %vm998 = vcmask 1024
    %999 = vst.msk [vmem:[%s7] sm:$0x3] %vm998, %v996
    // Predicated region
    $region61: #{tpu_custom_call.1} parent=1 // pred_check
      _
    $region62: #{tpu_custom_call.1} parent=1 // pred_check_branch
      %1001 = sbr.rel (0) target = $region64
    $region63: #{tpu_custom_call.1} parent=1 // pred_region
      _
    $region64: #{tpu_custom_call.1} parent=1 // pred_fallthru
      _
    // Predicated region
    $region65: #{tpu_custom_call.1} parent=1 // pred_check
      _
    $region66: #{tpu_custom_call.1} parent=1 // pred_check_branch
      %1003 = sbr.rel (0) target = $region68
    $region67: #{tpu_custom_call.1} parent=1 // pred_region
      _
    $region68: #{tpu_custom_call.1} parent=1 // pred_fallthru
      _
    %1004 = vsyncpa [#allocation3], 1
    %1005 = vsyncpa [#allocation6], 1
    %1006 = vsyncpa [#allocation9], 1
    %1007 = vsyncpa [#allocation4], 1
    %1008 = vsyncpa [#allocation12], 1

</llo_original>
